<compile_context>
chip_gen: v7x
topology: tpu7x:2x2x1
jax: 0.10.0
libtpu: 0.0.40
codegen_flags: <defaults>
</compile_context>

<pallas_src>
import functools

import numpy as np
import jax
import jax.numpy as jnp
from jax.experimental import pallas as pl
from jax.experimental.pallas import tpu as pltpu


def channel_attention_kernel(x_ref, wqk_ref, pqk_ref, wp_ref, pp_ref,
                             pool_ref, cv_ref, o_ref,
                             *, O, S, inter, ln_eps, neg_slope):
    # x_ref:    (Bt, C, O*S)  batch tile, lane-dense (O*S on lanes)
    # wqk_ref:  (2C, C)       [Wq ; Wk] stacked -> one fused Q/K matmul
    # pqk_ref:  (2C, 3)       columns [bias, gamma, beta] for stacked Q/K LayerNorm
    # wp_ref:   (C, C)        projection weight
    # pp_ref:   (C, 3)        columns [bias, gamma, beta] for projection LayerNorm
    # pool_ref: (S, E)        AvgPool2d((1, inter)) as a right-multiplied matrix
    # cv_ref:   SMEM (8,)     [conv_w0, conv_w1, conv_w2, conv_b, bn_scale, bn_shift, 0, 0]
    Bt, C, OS = x_ref.shape
    E = S // inter
    scaling = float(E) ** 0.5

    # Hoist all parameter loads / broadcast sources out of the batch loop.
    wqk = wqk_ref[...]                                              # (2C, C)
    b_qk, g_qk, be_qk = pqk_ref[:, 0:1], pqk_ref[:, 1:2], pqk_ref[:, 2:3]
    wp = wp_ref[...]                                                # (C, C)
    bp, gp, bep = pp_ref[:, 0:1], pp_ref[:, 1:2], pp_ref[:, 2:3]
    pool = pool_ref[...]                                            # (S, E)
    conv_b = cv_ref[3]
    bn_scale = cv_ref[4]
    bn_shift = cv_ref[5]

    def layer_norm_c(y, g, bta):
        # LayerNorm(16) over the channel axis == sublane axis 0 of (C, N) tiles.
        mu = jnp.mean(y, axis=0, keepdims=True)
        var = jnp.mean((y - mu) ** 2, axis=0, keepdims=True)
        return (y - mu) * jax.lax.rsqrt(var + ln_eps) * g + bta

    for b in range(Bt):
        xb = x_ref[b]                                               # (C, O*S) f32

        # ---- fused query+key Linear over all O image-channels at once ------
        y = jnp.dot(wqk, xb.astype(wqk.dtype),
                    preferred_element_type=jnp.float32) + b_qk      # (2C, O*S)
        yn = jnp.concatenate(
            [layer_norm_c(y[:C], g_qk[:C], be_qk[:C]),
             layer_norm_c(y[C:], g_qk[C:], be_qk[C:])], axis=0)     # (2C, O*S)

        # ---- 1x1 Conv2d(3->1) over o + LeakyReLU + BatchNorm2d (eval) ------
        z = cv_ref[0] * yn[:, 0:S]
        for o in range(1, O):
            z = z + cv_ref[o] * yn[:, o * S:(o + 1) * S]
        z = z + conv_b                                              # (2C, S)
        z = jnp.where(z >= 0, z, neg_slope * z)                     # LeakyReLU
        z = z * bn_scale + bn_shift                                 # BN (eval)

        # ---- AvgPool2d((1, inter)): q and k pooled in one matmul -----------
        p = jnp.dot(z, pool, preferred_element_type=jnp.float32)    # (2C, E)
        cq_p, ck_p = p[:C], p[C:]

        # ---- channel attention: atten[c, m] = sum_e cq_p[c,e] * ck_p[m,e] --
        atten = jax.lax.dot_general(
            cq_p, ck_p, (((1,), (1,)), ((), ())),
            preferred_element_type=jnp.float32) / scaling           # (C, C)
        mx = jnp.max(atten, axis=-1, keepdims=True)
        ex = jnp.exp(atten - mx)
        score = ex / jnp.sum(ex, axis=-1, keepdims=True)            # softmax over m
        # out[t, c, s] = x[t, c, s] * sum_{o,m} score[c, m]   (o-dim has size 1)
        wsum = jnp.sum(score, axis=-1, keepdims=True)               # (C, 1)

        # ---- projection Linear + LayerNorm over all O at once, one store ---
        proj = jnp.dot(wp, xb * wsum,
                       preferred_element_type=jnp.float32) + bp     # (C, O*S)
        o_ref[b] = layer_norm_c(proj, gp, bep).astype(o_ref.dtype)


def _pick_batch_tile(B, max_tile):
    for d in range(min(B, max_tile), 0, -1):
        if B % d == 0:
            return d
    return 1


def channel_attention_pallas(x, params, inter, *, max_batch_tile=8,
                             qk_matmul_bf16=True):
    """x: (B, O, C, S) float32 (same layout the PyTorch module receives)."""
    B, O, C, S = x.shape
    assert S % inter == 0, "sequence length must be divisible by `inter`"
    E = S // inter
    OS = O * S

    # Lane-dense view: (B, C, O*S) -- channels on sublanes, O*S on lanes.
    x_cn = jnp.transpose(x, (0, 2, 1, 3)).reshape(B, C, OS).astype(jnp.float32)

    # Stacked query/key weights -> a single fused (2C, C) @ (C, O*S) matmul.
    # bf16 operands are safe here: the q/k branch only reaches the output via
    # softmax row-sums (== 1), so the final values are unaffected.
    qk_dtype = jnp.bfloat16 if qk_matmul_bf16 else jnp.float32
    wqk = jnp.concatenate([params["wq"], params["wk"]], axis=0).astype(qk_dtype)
    pqk = jnp.stack(
        [jnp.concatenate([params["bq"], params["bk"]]),
         jnp.concatenate([params["gq"], params["gk"]]),
         jnp.concatenate([params["beq"], params["bek"]])],
        axis=1).astype(jnp.float32)                                 # (2C, 3)
    wp = params["wp"].astype(jnp.float32)                           # (C, C)
    pp = jnp.stack([params["bp"], params["gp"], params["bep"]],
                   axis=1).astype(jnp.float32)                      # (C, 3)

    bn_eps = 1e-5
    bn_scale = params["bn_gamma"] / jnp.sqrt(params["bn_var"] + bn_eps)
    bn_shift = params["bn_beta"] - params["bn_mean"] * bn_scale
    conv_pack = jnp.concatenate([
        params["conv_w"].reshape(-1), params["conv_b"].reshape(-1),
        bn_scale.reshape(-1), bn_shift.reshape(-1),
        jnp.zeros((2,), jnp.float32)]).astype(jnp.float32)          # (8,)

    # AvgPool2d((1, inter)) over the sequence axis as an (S, E) right-matmul.
    pool = jnp.asarray(np.kron(np.eye(E), np.ones((inter, 1))) / inter,
                       dtype=jnp.float32)                           # (S, E)

    Bt = _pick_batch_tile(B, max_batch_tile)

    kernel = functools.partial(channel_attention_kernel, O=O, S=S, inter=inter,
                               ln_eps=1e-5, neg_slope=0.01)

    out_cn = pl.pallas_call(
        kernel,
        out_shape=jax.ShapeDtypeStruct((B, C, OS), jnp.float32),
        grid=(B // Bt,),
        in_specs=[
            pl.BlockSpec((Bt, C, OS), lambda i: (i, 0, 0)),
            pl.BlockSpec((2 * C, C), lambda i: (0, 0)),
            pl.BlockSpec((2 * C, 3), lambda i: (0, 0)),
            pl.BlockSpec((C, C), lambda i: (0, 0)),
            pl.BlockSpec((C, 3), lambda i: (0, 0)),
            pl.BlockSpec((S, E), lambda i: (0, 0)),
            pl.BlockSpec(memory_space=pltpu.MemorySpace.SMEM),
        ],
        out_specs=pl.BlockSpec((Bt, C, OS), lambda i: (i, 0, 0)),
        compiler_params=pltpu.CompilerParams(
            dimension_semantics=("parallel",)),   # batch tiles are independent
    )(x_cn, wqk, pqk, wp, pp, pool, conv_pack)

    return jnp.transpose(out_cn.reshape(B, C, O, S), (0, 2, 1, 3))  # (B, O, C, S)


# ----------------------------- parameters ----------------------------------
def make_params(key, C=16, O=3):
    ks = jax.random.split(key, 5)
    xavier_std = (2.0 / (C + C)) ** 0.5                             # xavier_normal_
    return {
        "wq": xavier_std * jax.random.normal(ks[0], (C, C), jnp.float32),
        "bq": jnp.zeros((C,), jnp.float32),
        "gq": jnp.ones((C,), jnp.float32),
        "beq": jnp.zeros((C,), jnp.float32),
        "wk": xavier_std * jax.random.normal(ks[1], (C, C), jnp.float32),
        "bk": jnp.zeros((C,), jnp.float32),
        "gk": jnp.ones((C,), jnp.float32),
        "bek": jnp.zeros((C,), jnp.float32),
        "wp": xavier_std * jax.random.normal(ks[2], (C, C), jnp.float32),
        "bp": jnp.zeros((C,), jnp.float32),
        "gp": jnp.ones((C,), jnp.float32),
        "bep": jnp.zeros((C,), jnp.float32),
        # Conv2d(3, 1, kernel_size=(1,1)) weight squeezed to (3,), bias (1,)
        "conv_w": jax.random.normal(ks[3], (O,), jnp.float32) * (1.0 / O) ** 0.5,
        "conv_b": jax.random.normal(ks[4], (1,), jnp.float32) * 0.1,
        # BatchNorm2d(1) defaults (eval mode uses running stats)
        "bn_gamma": jnp.ones((1,), jnp.float32),
        "bn_beta": jnp.zeros((1,), jnp.float32),
        "bn_mean": jnp.zeros((1,), jnp.float32),
        "bn_var": jnp.ones((1,), jnp.float32),
    }


# ----------------------- pure-JAX reference (for check) --------------------
def ref_forward(x, params, inter):
    B, O, C, S = x.shape
    E = S // inter

    def lin_ln(t, w, b, g, be):
        y = jnp.einsum("bosc,dc->bosd", t, w) + b
        mu = y.mean(-1, keepdims=True)
        var = ((y - mu) ** 2).mean(-1, keepdims=True)
        return (y - mu) / jnp.sqrt(var + 1e-5) * g + be

    temp = jnp.transpose(x, (0, 1, 3, 2))                           # b o s c
    q = lin_ln(temp, params["wq"], params["bq"], params["gq"], params["beq"])
    k = lin_ln(temp, params["wk"], params["bk"], params["gk"], params["bek"])
    tq = jnp.transpose(q, (0, 1, 3, 2))                             # b o c s
    tk = jnp.transpose(k, (0, 1, 3, 2))

    def conv_bn(t):
        y = jnp.einsum("bocs,o->bcs", t, params["conv_w"]) + params["conv_b"]
        y = jnp.where(y >= 0, y, 0.01 * y)
        scale = params["bn_gamma"] / jnp.sqrt(params["bn_var"] + 1e-5)
        y = y * scale + (params["bn_beta"] - params["bn_mean"] * scale)
        return y[:, None]                                           # b 1 c s

    cq = conv_bn(tq).reshape(B, 1, C, E, inter).mean(-1)
    ck = conv_bn(tk).reshape(B, 1, C, E, inter).mean(-1)
    atten = jnp.einsum("bocs,boms->bocm", cq, ck) / (E ** 0.5)
    score = jax.nn.softmax(atten, axis=-1)
    out = jnp.einsum("btcs,bocm->btcs", x, score)
    out = jnp.transpose(out, (0, 1, 3, 2))                          # b o s c
    out = lin_ln(out, params["wp"], params["bp"], params["gp"], params["bep"])
    return jnp.transpose(out, (0, 1, 3, 2))                         # b o c s


if __name__ == "__main__":
    key = jax.random.PRNGKey(0)
    kx, kp = jax.random.split(key)

    # sequence_num=80, inter=10 -> extract_sequence=8 ; o must be 3 (Conv2d(3,1)),
    # c must be 16 (Linear(16,16)/LayerNorm(16)).
    B, O, C, S = 2, 3, 16, 80
    inter = 10

    x = jax.random.normal(kx, (B, O, C, S), jnp.float32)
    params = make_params(kp, C=C, O=O)

    out = channel_attention_pallas(x, params, inter)
    out = jax.block_until_ready(out)

    ref = jax.block_until_ready(ref_forward(x, params, inter))
    assert out.shape == (B, O, C, S)
    max_err = float(jnp.max(jnp.abs(out - ref)))
    if max_err > 2e-2:
        raise AssertionError(f"kernel vs reference mismatch, max abs err={max_err}")

    print("KERNEL_OK")
</pallas_src>

<mosaic_0001>
module attributes {stable_mosaic.version = 11 : i64} {
  func.func @channel_attention_kernel(%arg0: i32, %arg1: memref<2x16x240xf32, #tpu.memory_space<vmem>>, %arg2: memref<32x16xbf16, #tpu.memory_space<vmem>>, %arg3: memref<32x3xf32, #tpu.memory_space<vmem>>, %arg4: memref<16x16xf32, #tpu.memory_space<vmem>>, %arg5: memref<16x3xf32, #tpu.memory_space<vmem>>, %arg6: memref<80x8xf32, #tpu.memory_space<vmem>>, %arg7: memref<8xf32, #tpu.memory_space<smem>>, %arg8: memref<2x16x240xf32, #tpu.memory_space<vmem>>) attributes {dimension_semantics = [#tpu.dimension_semantics<parallel>], iteration_bounds = array<i64: 1>, scalar_prefetch = 0 : i64, scratch_operands = 0 : i64, tpu.core_type = #tpu.core_type<tc>, window_params = [{transform_indices = @transform_0, window_bounds = array<i64: 2, 16, 240>}, {pipeline_mode = #tpu.pipeline_mode<synchronous>, transform_indices = @transform_1, window_bounds = array<i64: 32, 16>}, {pipeline_mode = #tpu.pipeline_mode<synchronous>, transform_indices = @transform_2, window_bounds = array<i64: 32, 3>}, {pipeline_mode = #tpu.pipeline_mode<synchronous>, transform_indices = @transform_3, window_bounds = array<i64: 16, 16>}, {pipeline_mode = #tpu.pipeline_mode<synchronous>, transform_indices = @transform_4, window_bounds = array<i64: 16, 3>}, {pipeline_mode = #tpu.pipeline_mode<synchronous>, transform_indices = @transform_5, window_bounds = array<i64: 80, 8>}, {transform_indices = @transform_6, window_bounds = array<i64: 8>}, {transform_indices = @transform_7, window_bounds = array<i64: 2, 16, 240>}]} {
    %c0 = arith.constant 0 : index
    %c0_0 = arith.constant 0 : index
    %0 = vector.load %arg2[%c0, %c0_0] : memref<32x16xbf16, #tpu.memory_space<vmem>>, vector<32x16xbf16>
    %c0_1 = arith.constant 0 : index
    %c0_2 = arith.constant 0 : index
    %1 = vector.load %arg3[%c0_1, %c0_2] : memref<32x3xf32, #tpu.memory_space<vmem>>, vector<32x1xf32>
    %c0_3 = arith.constant 0 : index
    %c1 = arith.constant 1 : index
    %2 = vector.load %arg3[%c0_3, %c1] : memref<32x3xf32, #tpu.memory_space<vmem>>, vector<32x1xf32>
    %c0_4 = arith.constant 0 : index
    %c2 = arith.constant 2 : index
    %3 = vector.load %arg3[%c0_4, %c2] : memref<32x3xf32, #tpu.memory_space<vmem>>, vector<32x1xf32>
    %c0_5 = arith.constant 0 : index
    %c0_6 = arith.constant 0 : index
    %4 = vector.load %arg4[%c0_5, %c0_6] : memref<16x16xf32, #tpu.memory_space<vmem>>, vector<16x16xf32>
    %c0_7 = arith.constant 0 : index
    %c0_8 = arith.constant 0 : index
    %5 = vector.load %arg5[%c0_7, %c0_8] : memref<16x3xf32, #tpu.memory_space<vmem>>, vector<16x1xf32>
    %c0_9 = arith.constant 0 : index
    %c1_10 = arith.constant 1 : index
    %6 = vector.load %arg5[%c0_9, %c1_10] : memref<16x3xf32, #tpu.memory_space<vmem>>, vector<16x1xf32>
    %c0_11 = arith.constant 0 : index
    %c2_12 = arith.constant 2 : index
    %7 = vector.load %arg5[%c0_11, %c2_12] : memref<16x3xf32, #tpu.memory_space<vmem>>, vector<16x1xf32>
    %c0_13 = arith.constant 0 : index
    %c0_14 = arith.constant 0 : index
    %8 = vector.load %arg6[%c0_13, %c0_14] : memref<80x8xf32, #tpu.memory_space<vmem>>, vector<80x8xf32>
    %c3 = arith.constant 3 : index
    %9 = memref.load %arg7[%c3] : memref<8xf32, #tpu.memory_space<smem>>
    %c4 = arith.constant 4 : index
    %10 = memref.load %arg7[%c4] : memref<8xf32, #tpu.memory_space<smem>>
    %c5 = arith.constant 5 : index
    %11 = memref.load %arg7[%c5] : memref<8xf32, #tpu.memory_space<smem>>
    %c0_15 = arith.constant 0 : index
    %c0_16 = arith.constant 0 : index
    %c0_17 = arith.constant 0 : index
    %12 = vector.load %arg1[%c0_15, %c0_16, %c0_17] : memref<2x16x240xf32, #tpu.memory_space<vmem>>, vector<1x16x240xf32>
    %13 = vector.shape_cast %12 : vector<1x16x240xf32> to vector<16x240xf32>
    %14 = arith.truncf %13 : vector<16x240xf32> to vector<16x240xbf16>
    %cst = arith.constant dense<0.000000e+00> : vector<32x240xf32>
    %15 = tpu.matmul %0, %14, %cst {dimension_numbers = #tpu.dot_dimension_numbers<[1], [0], [0], [1], [0, 0, 1, 1], [], []>} : vector<32x16xbf16>, vector<16x240xbf16>, vector<32x240xf32> -> vector<32x240xf32>
    %16 = vector.broadcast %1 : vector<32x1xf32> to vector<32x240xf32>
    %17 = arith.addf %15, %16 : vector<32x240xf32>
    %18 = vector.extract_strided_slice %17 {offsets = [0, 0], sizes = [16, 240], strides = [1, 1]} : vector<32x240xf32> to vector<16x240xf32>
    %19 = vector.extract_strided_slice %2 {offsets = [0, 0], sizes = [16, 1], strides = [1, 1]} : vector<32x1xf32> to vector<16x1xf32>
    %20 = vector.extract_strided_slice %3 {offsets = [0, 0], sizes = [16, 1], strides = [1, 1]} : vector<32x1xf32> to vector<16x1xf32>
    %cst_18 = arith.constant dense<0.000000e+00> : vector<240xf32>
    %21 = vector.multi_reduction <add>, %18, %cst_18 [0] : vector<16x240xf32> to vector<240xf32>
    %22 = vector.shape_cast %21 : vector<240xf32> to vector<1x240xf32>
    %cst_19 = arith.constant 1.600000e+01 : f32
    %23 = vector.broadcast %cst_19 : f32 to vector<1x240xf32>
    %24 = arith.divf %22, %23 : vector<1x240xf32>
    %25 = vector.broadcast %24 : vector<1x240xf32> to vector<16x240xf32>
    %26 = arith.subf %18, %25 : vector<16x240xf32>
    %27 = arith.mulf %26, %26 : vector<16x240xf32>
    %cst_20 = arith.constant dense<0.000000e+00> : vector<240xf32>
    %28 = vector.multi_reduction <add>, %27, %cst_20 [0] : vector<16x240xf32> to vector<240xf32>
    %29 = vector.shape_cast %28 : vector<240xf32> to vector<1x240xf32>
    %cst_21 = arith.constant 1.600000e+01 : f32
    %30 = vector.broadcast %cst_21 : f32 to vector<1x240xf32>
    %31 = arith.divf %29, %30 : vector<1x240xf32>
    %32 = vector.broadcast %24 : vector<1x240xf32> to vector<16x240xf32>
    %33 = arith.subf %18, %32 : vector<16x240xf32>
    %cst_22 = arith.constant 9.99999974E-6 : f32
    %34 = vector.broadcast %cst_22 : f32 to vector<1x240xf32>
    %35 = arith.addf %31, %34 : vector<1x240xf32>
    %36 = math.rsqrt %35 : vector<1x240xf32>
    %37 = vector.broadcast %36 : vector<1x240xf32> to vector<16x240xf32>
    %38 = arith.mulf %33, %37 : vector<16x240xf32>
    %39 = vector.broadcast %19 : vector<16x1xf32> to vector<16x240xf32>
    %40 = arith.mulf %38, %39 : vector<16x240xf32>
    %41 = vector.broadcast %20 : vector<16x1xf32> to vector<16x240xf32>
    %42 = arith.addf %40, %41 : vector<16x240xf32>
    %43 = vector.extract_strided_slice %17 {offsets = [16, 0], sizes = [16, 240], strides = [1, 1]} : vector<32x240xf32> to vector<16x240xf32>
    %44 = vector.extract_strided_slice %2 {offsets = [16, 0], sizes = [16, 1], strides = [1, 1]} : vector<32x1xf32> to vector<16x1xf32>
    %45 = vector.extract_strided_slice %3 {offsets = [16, 0], sizes = [16, 1], strides = [1, 1]} : vector<32x1xf32> to vector<16x1xf32>
    %cst_23 = arith.constant dense<0.000000e+00> : vector<240xf32>
    %46 = vector.multi_reduction <add>, %43, %cst_23 [0] : vector<16x240xf32> to vector<240xf32>
    %47 = vector.shape_cast %46 : vector<240xf32> to vector<1x240xf32>
    %cst_24 = arith.constant 1.600000e+01 : f32
    %48 = vector.broadcast %cst_24 : f32 to vector<1x240xf32>
    %49 = arith.divf %47, %48 : vector<1x240xf32>
    %50 = vector.broadcast %49 : vector<1x240xf32> to vector<16x240xf32>
    %51 = arith.subf %43, %50 : vector<16x240xf32>
    %52 = arith.mulf %51, %51 : vector<16x240xf32>
    %cst_25 = arith.constant dense<0.000000e+00> : vector<240xf32>
    %53 = vector.multi_reduction <add>, %52, %cst_25 [0] : vector<16x240xf32> to vector<240xf32>
    %54 = vector.shape_cast %53 : vector<240xf32> to vector<1x240xf32>
    %cst_26 = arith.constant 1.600000e+01 : f32
    %55 = vector.broadcast %cst_26 : f32 to vector<1x240xf32>
    %56 = arith.divf %54, %55 : vector<1x240xf32>
    %57 = vector.broadcast %49 : vector<1x240xf32> to vector<16x240xf32>
    %58 = arith.subf %43, %57 : vector<16x240xf32>
    %cst_27 = arith.constant 9.99999974E-6 : f32
    %59 = vector.broadcast %cst_27 : f32 to vector<1x240xf32>
    %60 = arith.addf %56, %59 : vector<1x240xf32>
    %61 = math.rsqrt %60 : vector<1x240xf32>
    %62 = vector.broadcast %61 : vector<1x240xf32> to vector<16x240xf32>
    %63 = arith.mulf %58, %62 : vector<16x240xf32>
    %64 = vector.broadcast %44 : vector<16x1xf32> to vector<16x240xf32>
    %65 = arith.mulf %63, %64 : vector<16x240xf32>
    %66 = vector.broadcast %45 : vector<16x1xf32> to vector<16x240xf32>
    %67 = arith.addf %65, %66 : vector<16x240xf32>
    %68 = tpu.concatenate %42, %67 in 0 : vector<16x240xf32>, vector<16x240xf32> -> vector<32x240xf32>
    %c0_28 = arith.constant 0 : index
    %69 = memref.load %arg7[%c0_28] : memref<8xf32, #tpu.memory_space<smem>>
    %70 = vector.extract_strided_slice %68 {offsets = [0, 0], sizes = [32, 80], strides = [1, 1]} : vector<32x240xf32> to vector<32x80xf32>
    %71 = vector.broadcast %69 : f32 to vector<32x80xf32>
    %72 = arith.mulf %71, %70 : vector<32x80xf32>
    %c1_29 = arith.constant 1 : index
    %73 = memref.load %arg7[%c1_29] : memref<8xf32, #tpu.memory_space<smem>>
    %74 = vector.extract_strided_slice %68 {offsets = [0, 80], sizes = [32, 80], strides = [1, 1]} : vector<32x240xf32> to vector<32x80xf32>
    %75 = vector.broadcast %73 : f32 to vector<32x80xf32>
    %76 = arith.mulf %75, %74 : vector<32x80xf32>
    %77 = arith.addf %72, %76 : vector<32x80xf32>
    %c2_30 = arith.constant 2 : index
    %78 = memref.load %arg7[%c2_30] : memref<8xf32, #tpu.memory_space<smem>>
    %79 = vector.extract_strided_slice %68 {offsets = [0, 160], sizes = [32, 80], strides = [1, 1]} : vector<32x240xf32> to vector<32x80xf32>
    %80 = vector.broadcast %78 : f32 to vector<32x80xf32>
    %81 = arith.mulf %80, %79 : vector<32x80xf32>
    %82 = arith.addf %77, %81 : vector<32x80xf32>
    %83 = vector.broadcast %9 : f32 to vector<32x80xf32>
    %84 = arith.addf %82, %83 : vector<32x80xf32>
    %cst_31 = arith.constant 0.000000e+00 : f32
    %85 = vector.broadcast %cst_31 : f32 to vector<32x80xf32>
    %86 = arith.cmpf oge, %84, %85 : vector<32x80xf32>
    %cst_32 = arith.constant 0.00999999977 : f32
    %87 = vector.broadcast %cst_32 : f32 to vector<32x80xf32>
    %88 = arith.mulf %87, %84 : vector<32x80xf32>
    %89 = arith.select %86, %84, %88 : vector<32x80xi1>, vector<32x80xf32>
    %90 = vector.broadcast %10 : f32 to vector<32x80xf32>
    %91 = arith.mulf %89, %90 : vector<32x80xf32>
    %92 = vector.broadcast %11 : f32 to vector<32x80xf32>
    %93 = arith.addf %91, %92 : vector<32x80xf32>
    %cst_33 = arith.constant dense<0.000000e+00> : vector<32x8xf32>
    %94 = tpu.matmul %93, %8, %cst_33 {dimension_numbers = #tpu.dot_dimension_numbers<[1], [0], [0], [1], [0, 0, 1, 1], [], []>} : vector<32x80xf32>, vector<80x8xf32>, vector<32x8xf32> -> vector<32x8xf32>
    %95 = vector.extract_strided_slice %94 {offsets = [0, 0], sizes = [16, 8], strides = [1, 1]} : vector<32x8xf32> to vector<16x8xf32>
    %96 = vector.extract_strided_slice %94 {offsets = [16, 0], sizes = [16, 8], strides = [1, 1]} : vector<32x8xf32> to vector<16x8xf32>
    %cst_34 = arith.constant dense<0.000000e+00> : vector<16x16xf32>
    %97 = tpu.matmul %95, %96, %cst_34 {dimension_numbers = #tpu.dot_dimension_numbers<[1], [1], [0], [0], [0, 0, 1, 0], [], []>} : vector<16x8xf32>, vector<16x8xf32>, vector<16x16xf32> -> vector<16x16xf32>
    %cst_35 = arith.constant 2.82842708 : f32
    %98 = vector.broadcast %cst_35 : f32 to vector<16x16xf32>
    %99 = arith.divf %97, %98 : vector<16x16xf32>
    %cst_36 = arith.constant dense<0xFF800000> : vector<16xf32>
    %100 = vector.multi_reduction <maximumf>, %99, %cst_36 [1] : vector<16x16xf32> to vector<16xf32>
    %101 = vector.shape_cast %100 : vector<16xf32> to vector<16x1xf32>
    %102 = vector.broadcast %101 : vector<16x1xf32> to vector<16x16xf32>
    %103 = arith.subf %99, %102 : vector<16x16xf32>
    %104 = math.exp %103 : vector<16x16xf32>
    %cst_37 = arith.constant dense<0.000000e+00> : vector<16xf32>
    %105 = vector.multi_reduction <add>, %104, %cst_37 [1] : vector<16x16xf32> to vector<16xf32>
    %106 = vector.shape_cast %105 : vector<16xf32> to vector<16x1xf32>
    %107 = vector.broadcast %106 : vector<16x1xf32> to vector<16x16xf32>
    %108 = arith.divf %104, %107 : vector<16x16xf32>
    %cst_38 = arith.constant dense<0.000000e+00> : vector<16xf32>
    %109 = vector.multi_reduction <add>, %108, %cst_38 [1] : vector<16x16xf32> to vector<16xf32>
    %110 = vector.shape_cast %109 : vector<16xf32> to vector<16x1xf32>
    %111 = vector.broadcast %110 : vector<16x1xf32> to vector<16x240xf32>
    %112 = arith.mulf %13, %111 : vector<16x240xf32>
    %cst_39 = arith.constant dense<0.000000e+00> : vector<16x240xf32>
    %113 = tpu.matmul %4, %112, %cst_39 {dimension_numbers = #tpu.dot_dimension_numbers<[1], [0], [0], [1], [0, 0, 1, 1], [], []>} : vector<16x16xf32>, vector<16x240xf32>, vector<16x240xf32> -> vector<16x240xf32>
    %114 = vector.broadcast %5 : vector<16x1xf32> to vector<16x240xf32>
    %115 = arith.addf %113, %114 : vector<16x240xf32>
    %cst_40 = arith.constant dense<0.000000e+00> : vector<240xf32>
    %116 = vector.multi_reduction <add>, %115, %cst_40 [0] : vector<16x240xf32> to vector<240xf32>
    %117 = vector.shape_cast %116 : vector<240xf32> to vector<1x240xf32>
    %cst_41 = arith.constant 1.600000e+01 : f32
    %118 = vector.broadcast %cst_41 : f32 to vector<1x240xf32>
    %119 = arith.divf %117, %118 : vector<1x240xf32>
    %120 = vector.broadcast %119 : vector<1x240xf32> to vector<16x240xf32>
    %121 = arith.subf %115, %120 : vector<16x240xf32>
    %122 = arith.mulf %121, %121 : vector<16x240xf32>
    %cst_42 = arith.constant dense<0.000000e+00> : vector<240xf32>
    %123 = vector.multi_reduction <add>, %122, %cst_42 [0] : vector<16x240xf32> to vector<240xf32>
    %124 = vector.shape_cast %123 : vector<240xf32> to vector<1x240xf32>
    %cst_43 = arith.constant 1.600000e+01 : f32
    %125 = vector.broadcast %cst_43 : f32 to vector<1x240xf32>
    %126 = arith.divf %124, %125 : vector<1x240xf32>
    %127 = vector.broadcast %119 : vector<1x240xf32> to vector<16x240xf32>
    %128 = arith.subf %115, %127 : vector<16x240xf32>
    %cst_44 = arith.constant 9.99999974E-6 : f32
    %129 = vector.broadcast %cst_44 : f32 to vector<1x240xf32>
    %130 = arith.addf %126, %129 : vector<1x240xf32>
    %131 = math.rsqrt %130 : vector<1x240xf32>
    %132 = vector.broadcast %131 : vector<1x240xf32> to vector<16x240xf32>
    %133 = arith.mulf %128, %132 : vector<16x240xf32>
    %134 = vector.broadcast %6 : vector<16x1xf32> to vector<16x240xf32>
    %135 = arith.mulf %133, %134 : vector<16x240xf32>
    %136 = vector.broadcast %7 : vector<16x1xf32> to vector<16x240xf32>
    %137 = arith.addf %135, %136 : vector<16x240xf32>
    %c0_45 = arith.constant 0 : index
    %c0_46 = arith.constant 0 : index
    %c0_47 = arith.constant 0 : index
    %138 = vector.load %arg8[%c0_45, %c0_46, %c0_47] : memref<2x16x240xf32, #tpu.memory_space<vmem>>, vector<1x16x240xf32>
    %139 = vector.shape_cast %138 : vector<1x16x240xf32> to vector<16x240xf32>
    %140 = vector.shape_cast %137 : vector<16x240xf32> to vector<1x16x240xf32>
    tpu.vector_store %arg8[%c0_45, %c0_46, %c0_47], %140 {strides = array<i32>} : memref<2x16x240xf32, #tpu.memory_space<vmem>>, vector<1x16x240xf32>,
    %c1_48 = arith.constant 1 : index
    %c0_49 = arith.constant 0 : index
    %c0_50 = arith.constant 0 : index
    %141 = vector.load %arg1[%c1_48, %c0_49, %c0_50] : memref<2x16x240xf32, #tpu.memory_space<vmem>>, vector<1x16x240xf32>
    %142 = vector.shape_cast %141 : vector<1x16x240xf32> to vector<16x240xf32>
    %143 = arith.truncf %142 : vector<16x240xf32> to vector<16x240xbf16>
    %cst_51 = arith.constant dense<0.000000e+00> : vector<32x240xf32>
    %144 = tpu.matmul %0, %143, %cst_51 {dimension_numbers = #tpu.dot_dimension_numbers<[1], [0], [0], [1], [0, 0, 1, 1], [], []>} : vector<32x16xbf16>, vector<16x240xbf16>, vector<32x240xf32> -> vector<32x240xf32>
    %145 = vector.broadcast %1 : vector<32x1xf32> to vector<32x240xf32>
    %146 = arith.addf %144, %145 : vector<32x240xf32>
    %147 = vector.extract_strided_slice %146 {offsets = [0, 0], sizes = [16, 240], strides = [1, 1]} : vector<32x240xf32> to vector<16x240xf32>
    %148 = vector.extract_strided_slice %2 {offsets = [0, 0], sizes = [16, 1], strides = [1, 1]} : vector<32x1xf32> to vector<16x1xf32>
    %149 = vector.extract_strided_slice %3 {offsets = [0, 0], sizes = [16, 1], strides = [1, 1]} : vector<32x1xf32> to vector<16x1xf32>
    %cst_52 = arith.constant dense<0.000000e+00> : vector<240xf32>
    %150 = vector.multi_reduction <add>, %147, %cst_52 [0] : vector<16x240xf32> to vector<240xf32>
    %151 = vector.shape_cast %150 : vector<240xf32> to vector<1x240xf32>
    %cst_53 = arith.constant 1.600000e+01 : f32
    %152 = vector.broadcast %cst_53 : f32 to vector<1x240xf32>
    %153 = arith.divf %151, %152 : vector<1x240xf32>
    %154 = vector.broadcast %153 : vector<1x240xf32> to vector<16x240xf32>
    %155 = arith.subf %147, %154 : vector<16x240xf32>
    %156 = arith.mulf %155, %155 : vector<16x240xf32>
    %cst_54 = arith.constant dense<0.000000e+00> : vector<240xf32>
    %157 = vector.multi_reduction <add>, %156, %cst_54 [0] : vector<16x240xf32> to vector<240xf32>
    %158 = vector.shape_cast %157 : vector<240xf32> to vector<1x240xf32>
    %cst_55 = arith.constant 1.600000e+01 : f32
    %159 = vector.broadcast %cst_55 : f32 to vector<1x240xf32>
    %160 = arith.divf %158, %159 : vector<1x240xf32>
    %161 = vector.broadcast %153 : vector<1x240xf32> to vector<16x240xf32>
    %162 = arith.subf %147, %161 : vector<16x240xf32>
    %cst_56 = arith.constant 9.99999974E-6 : f32
    %163 = vector.broadcast %cst_56 : f32 to vector<1x240xf32>
    %164 = arith.addf %160, %163 : vector<1x240xf32>
    %165 = math.rsqrt %164 : vector<1x240xf32>
    %166 = vector.broadcast %165 : vector<1x240xf32> to vector<16x240xf32>
    %167 = arith.mulf %162, %166 : vector<16x240xf32>
    %168 = vector.broadcast %148 : vector<16x1xf32> to vector<16x240xf32>
    %169 = arith.mulf %167, %168 : vector<16x240xf32>
    %170 = vector.broadcast %149 : vector<16x1xf32> to vector<16x240xf32>
    %171 = arith.addf %169, %170 : vector<16x240xf32>
    %172 = vector.extract_strided_slice %146 {offsets = [16, 0], sizes = [16, 240], strides = [1, 1]} : vector<32x240xf32> to vector<16x240xf32>
    %173 = vector.extract_strided_slice %2 {offsets = [16, 0], sizes = [16, 1], strides = [1, 1]} : vector<32x1xf32> to vector<16x1xf32>
    %174 = vector.extract_strided_slice %3 {offsets = [16, 0], sizes = [16, 1], strides = [1, 1]} : vector<32x1xf32> to vector<16x1xf32>
    %cst_57 = arith.constant dense<0.000000e+00> : vector<240xf32>
    %175 = vector.multi_reduction <add>, %172, %cst_57 [0] : vector<16x240xf32> to vector<240xf32>
    %176 = vector.shape_cast %175 : vector<240xf32> to vector<1x240xf32>
    %cst_58 = arith.constant 1.600000e+01 : f32
    %177 = vector.broadcast %cst_58 : f32 to vector<1x240xf32>
    %178 = arith.divf %176, %177 : vector<1x240xf32>
    %179 = vector.broadcast %178 : vector<1x240xf32> to vector<16x240xf32>
    %180 = arith.subf %172, %179 : vector<16x240xf32>
    %181 = arith.mulf %180, %180 : vector<16x240xf32>
    %cst_59 = arith.constant dense<0.000000e+00> : vector<240xf32>
    %182 = vector.multi_reduction <add>, %181, %cst_59 [0] : vector<16x240xf32> to vector<240xf32>
    %183 = vector.shape_cast %182 : vector<240xf32> to vector<1x240xf32>
    %cst_60 = arith.constant 1.600000e+01 : f32
    %184 = vector.broadcast %cst_60 : f32 to vector<1x240xf32>
    %185 = arith.divf %183, %184 : vector<1x240xf32>
    %186 = vector.broadcast %178 : vector<1x240xf32> to vector<16x240xf32>
    %187 = arith.subf %172, %186 : vector<16x240xf32>
    %cst_61 = arith.constant 9.99999974E-6 : f32
    %188 = vector.broadcast %cst_61 : f32 to vector<1x240xf32>
    %189 = arith.addf %185, %188 : vector<1x240xf32>
    %190 = math.rsqrt %189 : vector<1x240xf32>
    %191 = vector.broadcast %190 : vector<1x240xf32> to vector<16x240xf32>
    %192 = arith.mulf %187, %191 : vector<16x240xf32>
    %193 = vector.broadcast %173 : vector<16x1xf32> to vector<16x240xf32>
    %194 = arith.mulf %192, %193 : vector<16x240xf32>
    %195 = vector.broadcast %174 : vector<16x1xf32> to vector<16x240xf32>
    %196 = arith.addf %194, %195 : vector<16x240xf32>
    %197 = tpu.concatenate %171, %196 in 0 : vector<16x240xf32>, vector<16x240xf32> -> vector<32x240xf32>
    %c0_62 = arith.constant 0 : index
    %198 = memref.load %arg7[%c0_62] : memref<8xf32, #tpu.memory_space<smem>>
    %199 = vector.extract_strided_slice %197 {offsets = [0, 0], sizes = [32, 80], strides = [1, 1]} : vector<32x240xf32> to vector<32x80xf32>
    %200 = vector.broadcast %198 : f32 to vector<32x80xf32>
    %201 = arith.mulf %200, %199 : vector<32x80xf32>
    %c1_63 = arith.constant 1 : index
    %202 = memref.load %arg7[%c1_63] : memref<8xf32, #tpu.memory_space<smem>>
    %203 = vector.extract_strided_slice %197 {offsets = [0, 80], sizes = [32, 80], strides = [1, 1]} : vector<32x240xf32> to vector<32x80xf32>
    %204 = vector.broadcast %202 : f32 to vector<32x80xf32>
    %205 = arith.mulf %204, %203 : vector<32x80xf32>
    %206 = arith.addf %201, %205 : vector<32x80xf32>
    %c2_64 = arith.constant 2 : index
    %207 = memref.load %arg7[%c2_64] : memref<8xf32, #tpu.memory_space<smem>>
    %208 = vector.extract_strided_slice %197 {offsets = [0, 160], sizes = [32, 80], strides = [1, 1]} : vector<32x240xf32> to vector<32x80xf32>
    %209 = vector.broadcast %207 : f32 to vector<32x80xf32>
    %210 = arith.mulf %209, %208 : vector<32x80xf32>
    %211 = arith.addf %206, %210 : vector<32x80xf32>
    %212 = vector.broadcast %9 : f32 to vector<32x80xf32>
    %213 = arith.addf %211, %212 : vector<32x80xf32>
    %cst_65 = arith.constant 0.000000e+00 : f32
    %214 = vector.broadcast %cst_65 : f32 to vector<32x80xf32>
    %215 = arith.cmpf oge, %213, %214 : vector<32x80xf32>
    %cst_66 = arith.constant 0.00999999977 : f32
    %216 = vector.broadcast %cst_66 : f32 to vector<32x80xf32>
    %217 = arith.mulf %216, %213 : vector<32x80xf32>
    %218 = arith.select %215, %213, %217 : vector<32x80xi1>, vector<32x80xf32>
    %219 = vector.broadcast %10 : f32 to vector<32x80xf32>
    %220 = arith.mulf %218, %219 : vector<32x80xf32>
    %221 = vector.broadcast %11 : f32 to vector<32x80xf32>
    %222 = arith.addf %220, %221 : vector<32x80xf32>
    %cst_67 = arith.constant dense<0.000000e+00> : vector<32x8xf32>
    %223 = tpu.matmul %222, %8, %cst_67 {dimension_numbers = #tpu.dot_dimension_numbers<[1], [0], [0], [1], [0, 0, 1, 1], [], []>} : vector<32x80xf32>, vector<80x8xf32>, vector<32x8xf32> -> vector<32x8xf32>
    %224 = vector.extract_strided_slice %223 {offsets = [0, 0], sizes = [16, 8], strides = [1, 1]} : vector<32x8xf32> to vector<16x8xf32>
    %225 = vector.extract_strided_slice %223 {offsets = [16, 0], sizes = [16, 8], strides = [1, 1]} : vector<32x8xf32> to vector<16x8xf32>
    %cst_68 = arith.constant dense<0.000000e+00> : vector<16x16xf32>
    %226 = tpu.matmul %224, %225, %cst_68 {dimension_numbers = #tpu.dot_dimension_numbers<[1], [1], [0], [0], [0, 0, 1, 0], [], []>} : vector<16x8xf32>, vector<16x8xf32>, vector<16x16xf32> -> vector<16x16xf32>
    %cst_69 = arith.constant 2.82842708 : f32
    %227 = vector.broadcast %cst_69 : f32 to vector<16x16xf32>
    %228 = arith.divf %226, %227 : vector<16x16xf32>
    %cst_70 = arith.constant dense<0xFF800000> : vector<16xf32>
    %229 = vector.multi_reduction <maximumf>, %228, %cst_70 [1] : vector<16x16xf32> to vector<16xf32>
    %230 = vector.shape_cast %229 : vector<16xf32> to vector<16x1xf32>
    %231 = vector.broadcast %230 : vector<16x1xf32> to vector<16x16xf32>
    %232 = arith.subf %228, %231 : vector<16x16xf32>
    %233 = math.exp %232 : vector<16x16xf32>
    %cst_71 = arith.constant dense<0.000000e+00> : vector<16xf32>
    %234 = vector.multi_reduction <add>, %233, %cst_71 [1] : vector<16x16xf32> to vector<16xf32>
    %235 = vector.shape_cast %234 : vector<16xf32> to vector<16x1xf32>
    %236 = vector.broadcast %235 : vector<16x1xf32> to vector<16x16xf32>
    %237 = arith.divf %233, %236 : vector<16x16xf32>
    %cst_72 = arith.constant dense<0.000000e+00> : vector<16xf32>
    %238 = vector.multi_reduction <add>, %237, %cst_72 [1] : vector<16x16xf32> to vector<16xf32>
    %239 = vector.shape_cast %238 : vector<16xf32> to vector<16x1xf32>
    %240 = vector.broadcast %239 : vector<16x1xf32> to vector<16x240xf32>
    %241 = arith.mulf %142, %240 : vector<16x240xf32>
    %cst_73 = arith.constant dense<0.000000e+00> : vector<16x240xf32>
    %242 = tpu.matmul %4, %241, %cst_73 {dimension_numbers = #tpu.dot_dimension_numbers<[1], [0], [0], [1], [0, 0, 1, 1], [], []>} : vector<16x16xf32>, vector<16x240xf32>, vector<16x240xf32> -> vector<16x240xf32>
    %243 = vector.broadcast %5 : vector<16x1xf32> to vector<16x240xf32>
    %244 = arith.addf %242, %243 : vector<16x240xf32>
    %cst_74 = arith.constant dense<0.000000e+00> : vector<240xf32>
    %245 = vector.multi_reduction <add>, %244, %cst_74 [0] : vector<16x240xf32> to vector<240xf32>
    %246 = vector.shape_cast %245 : vector<240xf32> to vector<1x240xf32>
    %cst_75 = arith.constant 1.600000e+01 : f32
    %247 = vector.broadcast %cst_75 : f32 to vector<1x240xf32>
    %248 = arith.divf %246, %247 : vector<1x240xf32>
    %249 = vector.broadcast %248 : vector<1x240xf32> to vector<16x240xf32>
    %250 = arith.subf %244, %249 : vector<16x240xf32>
    %251 = arith.mulf %250, %250 : vector<16x240xf32>
    %cst_76 = arith.constant dense<0.000000e+00> : vector<240xf32>
    %252 = vector.multi_reduction <add>, %251, %cst_76 [0] : vector<16x240xf32> to vector<240xf32>
    %253 = vector.shape_cast %252 : vector<240xf32> to vector<1x240xf32>
    %cst_77 = arith.constant 1.600000e+01 : f32
    %254 = vector.broadcast %cst_77 : f32 to vector<1x240xf32>
    %255 = arith.divf %253, %254 : vector<1x240xf32>
    %256 = vector.broadcast %248 : vector<1x240xf32> to vector<16x240xf32>
    %257 = arith.subf %244, %256 : vector<16x240xf32>
    %cst_78 = arith.constant 9.99999974E-6 : f32
    %258 = vector.broadcast %cst_78 : f32 to vector<1x240xf32>
    %259 = arith.addf %255, %258 : vector<1x240xf32>
    %260 = math.rsqrt %259 : vector<1x240xf32>
    %261 = vector.broadcast %260 : vector<1x240xf32> to vector<16x240xf32>
    %262 = arith.mulf %257, %261 : vector<16x240xf32>
    %263 = vector.broadcast %6 : vector<16x1xf32> to vector<16x240xf32>
    %264 = arith.mulf %262, %263 : vector<16x240xf32>
    %265 = vector.broadcast %7 : vector<16x1xf32> to vector<16x240xf32>
    %266 = arith.addf %264, %265 : vector<16x240xf32>
    %c1_79 = arith.constant 1 : index
    %c0_80 = arith.constant 0 : index
    %c0_81 = arith.constant 0 : index
    %267 = vector.load %arg8[%c1_79, %c0_80, %c0_81] : memref<2x16x240xf32, #tpu.memory_space<vmem>>, vector<1x16x240xf32>
    %268 = vector.shape_cast %267 : vector<1x16x240xf32> to vector<16x240xf32>
    %269 = vector.shape_cast %266 : vector<16x240xf32> to vector<1x16x240xf32>
    tpu.vector_store %arg8[%c1_79, %c0_80, %c0_81], %269 {strides = array<i32>} : memref<2x16x240xf32, #tpu.memory_space<vmem>>, vector<1x16x240xf32>,
    return
  }
  func.func @transform_0(%arg0: i32) -> (i32, i32, i32) {
    %c0_i32 = arith.constant 0 : i32
    %c0_i32_0 = arith.constant 0 : i32
    %c0_i32_1 = arith.constant 0 : i32
    return %arg0, %c0_i32, %c0_i32_0 : i32, i32, i32
  }
  func.func @transform_1(%arg0: i32) -> (i32, i32) {
    %c0_i32 = arith.constant 0 : i32
    %c0_i32_0 = arith.constant 0 : i32
    %c0_i32_1 = arith.constant 0 : i32
    return %c0_i32, %c0_i32_0 : i32, i32
  }
  func.func @transform_2(%arg0: i32) -> (i32, i32) {
    %c0_i32 = arith.constant 0 : i32
    %c0_i32_0 = arith.constant 0 : i32
    %c0_i32_1 = arith.constant 0 : i32
    return %c0_i32, %c0_i32_0 : i32, i32
  }
  func.func @transform_3(%arg0: i32) -> (i32, i32) {
    %c0_i32 = arith.constant 0 : i32
    %c0_i32_0 = arith.constant 0 : i32
    %c0_i32_1 = arith.constant 0 : i32
    return %c0_i32, %c0_i32_0 : i32, i32
  }
  func.func @transform_4(%arg0: i32) -> (i32, i32) {
    %c0_i32 = arith.constant 0 : i32
    %c0_i32_0 = arith.constant 0 : i32
    %c0_i32_1 = arith.constant 0 : i32
    return %c0_i32, %c0_i32_0 : i32, i32
  }
  func.func @transform_5(%arg0: i32) -> (i32, i32) {
    %c0_i32 = arith.constant 0 : i32
    %c0_i32_0 = arith.constant 0 : i32
    %c0_i32_1 = arith.constant 0 : i32
    return %c0_i32, %c0_i32_0 : i32, i32
  }
  func.func @transform_6(%arg0: i32) -> i32 {
    %c0_i32 = arith.constant 0 : i32
    %c0_i32_0 = arith.constant 0 : i32
    return %c0_i32 : i32
  }
  func.func @transform_7(%arg0: i32) -> (i32, i32, i32) {
    %c0_i32 = arith.constant 0 : i32
    %c0_i32_0 = arith.constant 0 : i32
    %c0_i32_1 = arith.constant 0 : i32
    return %arg0, %c0_i32, %c0_i32_0 : i32, i32, i32
  }
}

</mosaic_0001>

<llo_original>
// kernel: tpu_custom_call.1
$region0: #{tpu_custom_call.1}
  #allocation0 [shape = 'u32[]', space=smem, size = 0x4, offset = 0x4, fixed_abs, tag = 'smem constant byte address 0x4 - core index']
  #allocation1 [shape = 'u32[144,128]{1,0:T(1,128)}', space=vmem, size = 0x12000, scoped, tag = 'internal scratch']
  %s0 = inlined_call_operand.vmem [shape: f32[2,16,240], index: 0, kind: input, shape index: {}]
  %s1 = inlined_call_operand.vmem [shape: bf16[32,16], index: 1, kind: input, shape index: {}]
  %s2 = inlined_call_operand.vmem [shape: f32[32,3], index: 2, kind: input, shape index: {}]
  %s3 = inlined_call_operand.vmem [shape: f32[16,16], index: 3, kind: input, shape index: {}]
  %s4 = inlined_call_operand.vmem [shape: f32[16,3], index: 4, kind: input, shape index: {}]
  %s5 = inlined_call_operand.vmem [shape: f32[80,8], index: 5, kind: input, shape index: {}]
  %s6 = inlined_call_operand.vmem [shape: f32[8], index: 6, kind: input, shape index: {}]
  %s7 = inlined_call_operand.hbm [shape: f32[2,16,240], index: 7, kind: output, shape index: {}]
  %s8 = sld [smem:[#allocation0]]
  $region42: #{tpu_custom_call.1} parent=0
    _
  %s10 = ssub.s32 1, %s8
  %s11 = scalar_select 0, %s10, %s8
  $region1: #{tpu_custom_call.1} parent=0
    #allocation2 [shape = 'u8[512]{0}', space=smem, size = 0x200, scoped, tag = 'input window, operand 6, single buffered']
    #allocation3 [shape = 's32[1]{0}', space=sflag, size = 0x4, scoped, tag = 'scoped memory for tpu_custom_call.1']
    #allocation4 [shape = 's32[1]{0}', space=sflag, size = 0x4, scoped, tag = 'scoped memory for tpu_custom_call.1']
    #allocation5 [shape = 'u8[32768]{0}', space=vmem, size = 0x8000, scoped, tag = 'output window, operand 0, single buffered']
    %12 = vsyncpa [#allocation4], 0
    %13 = vsyncpa [#allocation3], 0
    // Predicated region
    $region2: #{tpu_custom_call.1} parent=1 // pred_check
      _
    $region3: #{tpu_custom_call.1} parent=1 // pred_check_branch
      %15 = sbr.rel (0) target = $region5
    $region4: #{tpu_custom_call.1} parent=1 // pred_region
      _
    $region5: #{tpu_custom_call.1} parent=1 // pred_fallthru
      _
    // Predicated region
    $region6: #{tpu_custom_call.1} parent=1 // pred_check
      _
    $region7: #{tpu_custom_call.1} parent=1 // pred_check_branch
      %17 = sbr.rel (0) target = $region9
    $region8: #{tpu_custom_call.1} parent=1 // pred_region
      _
    $region9: #{tpu_custom_call.1} parent=1 // pred_fallthru
      _
    // Predicated region
    $region10: #{tpu_custom_call.1} parent=1 // pred_check
      _
    $region11: #{tpu_custom_call.1} parent=1 // pred_check_branch
      %19 = sbr.rel (0) target = $region13
    $region12: #{tpu_custom_call.1} parent=1 // pred_region
      _
    $region13: #{tpu_custom_call.1} parent=1 // pred_fallthru
      _
    // Predicated region
    $region14: #{tpu_custom_call.1} parent=1 // pred_check
      _
    $region15: #{tpu_custom_call.1} parent=1 // pred_check_branch
      %21 = sbr.rel (0) target = $region17
    $region16: #{tpu_custom_call.1} parent=1 // pred_region
      _
    $region17: #{tpu_custom_call.1} parent=1 // pred_fallthru
      _
    // Predicated region
    $region18: #{tpu_custom_call.1} parent=1 // pred_check
      _
    $region19: #{tpu_custom_call.1} parent=1 // pred_check_branch
      %23 = sbr.rel (0) target = $region21
    $region20: #{tpu_custom_call.1} parent=1 // pred_region
      _
    $region21: #{tpu_custom_call.1} parent=1 // pred_fallthru
      _
    // Predicated region
    $region22: #{tpu_custom_call.1} parent=1 // pred_check
      _
    $region23: #{tpu_custom_call.1} parent=1 // pred_check_branch
      %25 = sbr.rel (0) target = $region25
    $region24: #{tpu_custom_call.1} parent=1 // pred_region
      _
    $region25: #{tpu_custom_call.1} parent=1 // pred_fallthru
      _
    // Predicated region
    $region26: #{tpu_custom_call.1} parent=1 // pred_check
      _
    $region27: #{tpu_custom_call.1} parent=1 // pred_check_branch
      %27 = sbr.rel (0) target = $region29
    $region28: #{tpu_custom_call.1} parent=1 // pred_region
      %s29 = ssub.s32 16, 16
      %30 = vsyncadd [#allocation4], %s29
      %s32 = sshll.u32 %s6, 4
      %s33 = int_to_ptr.vmem [resolvable:$true] %s32
      %35 = dma.vmem_to_smem %s33, 16, [#allocation2], [#allocation4]
    $region29: #{tpu_custom_call.1} parent=1 // pred_fallthru
      _
    // Predicated region
    $region30: #{tpu_custom_call.1} parent=1 // pred_check
      _
    $region31: #{tpu_custom_call.1} parent=1 // pred_check_branch
      %37 = sbr.rel (0) target = $region33
    $region32: #{tpu_custom_call.1} parent=1 // pred_region
      %38 = dma.done [#allocation4], 16
    $region33: #{tpu_custom_call.1} parent=1 // pred_fallthru
      _
    %39 = sfence
    %v41 = vld [vmem:[%s1] sm:$0xf]
    %v42 = vld [vmem:[%s1 + $0x4] sm:$0xf]
    %v43 = vld [vmem:[%s1 + $0x8] sm:$0xf]
    %v44 = vld [vmem:[%s1 + $0xc] sm:$0xf]
    %v45 = vld [vmem:[%s2] sm:$0xff]
    %v46 = vld [vmem:[%s2 + $0x8] sm:$0xff]
    %v47 = vld [vmem:[%s2 + $0x10] sm:$0xff]
    %v48 = vld [vmem:[%s2 + $0x18] sm:$0xff]
    %v49 = vld [vmem:[%s3] sm:$0xff]
    %v50 = vld [vmem:[%s3 + $0x8] sm:$0xff]
    %v51 = vld [vmem:[%s4] sm:$0xff]
    %v52 = vld [vmem:[%s4 + $0x8] sm:$0xff]
    %v53 = vld [vmem:[%s5] sm:$0xff]
    %v54 = vld [vmem:[%s5 + $0x8] sm:$0xff]
    %v55 = vld [vmem:[%s5 + $0x10] sm:$0xff]
    %v56 = vld [vmem:[%s5 + $0x18] sm:$0xff]
    %v57 = vld [vmem:[%s5 + $0x20] sm:$0xff]
    %v58 = vld [vmem:[%s5 + $0x28] sm:$0xff]
    %v59 = vld [vmem:[%s5 + $0x30] sm:$0xff]
    %v60 = vld [vmem:[%s5 + $0x38] sm:$0xff]
    %v61 = vld [vmem:[%s5 + $0x40] sm:$0xff]
    %v62 = vld [vmem:[%s5 + $0x48] sm:$0xff]
    %s63 = sld [smem:[#allocation2 + $0x3]]
    %s64 = sld [smem:[#allocation2 + $0x4]]
    %s65 = sld [smem:[#allocation2 + $0x5]]
    %v66 = vld [vmem:[%s0] sm:$0xff]
    %v67 = vld [vmem:[%s0 + $0x8] sm:$0xff]
    %v68 = vld [vmem:[%s0 + $0x10] sm:$0xff]
    %v69 = vld [vmem:[%s0 + $0x18] sm:$0xff]
    %v70 = vpack.c.bf16 %v68, %v66
    %v71 = vpack.c.bf16 %v69, %v67
    %73 = vset.pattern.permute.xlu0 0
    %74 = vperm.xlu0 %73, %v45
    %v75 = vpop.permute.xlu0 %74
    %78 = vset.pattern.permute.xlu0 0
    %79 = vperm.xlu0 %78, %v46
    %v80 = vpop.permute.xlu0 %79
    %83 = vset.pattern.permute.xlu0 0
    %84 = vperm.xlu0 %83, %v47
    %v85 = vpop.permute.xlu0 %84
    %88 = vset.pattern.permute.xlu0 0
    %89 = vperm.xlu0 %88, %v48
    %v90 = vpop.permute.xlu0 %89
    %v96 = vunpack.c.l.b16 %v41
    %v97 = vunpack.c.l.b16 %v42
    %v98 = vunpack.c.l.b16 %v43
    %v99 = vunpack.c.l.b16 %v44
    %v100 = vpack.c.b16 %v97, %v96
    %v101 = vpack.c.b16 %v99, %v98
    %vm102 = vcmask 130048
    %v104 = vsel %vm102, %v100, 0
    %v107 = vsel %vm102, %v101, 0
    %109 = vmatprep.subr.bf16.mxu0 %v71
    %110 = vmatpush1.bf16.msra.mxu0 %v70
    %111 = vmatprep.subr.bf16.mxu0 0
    %112 = vmatpush1.bf16.msra.mxu0 0
    %113 = vmatprep.subr.bf16.mxu0 0
    %114 = vmatpush1.bf16.msra.mxu0 0
    %115 = vmatprep.subr.bf16.mxu0 0
    %116 = vmatpush1.bf16.msra.mxu0 0
    %117 = vmatprep.subr.bf16.mxu0 0
    %118 = vmatpush1.bf16.msra.mxu0 0
    %119 = vmatprep.subr.bf16.mxu0 0
    %120 = vmatpush1.bf16.msra.mxu0 0
    %121 = vmatprep.subr.bf16.mxu0 0
    %122 = vmatpush1.bf16.msra.mxu0 0
    %123 = vmatprep.subr.bf16.mxu0 0
    %124 = vmatpush1.bf16.msra.mxu0 0
    %125 = vmatprep.subr.bf16.mxu0 0
    %126 = vmatpush1.bf16.msra.mxu0 0
    %127 = vmatprep.subr.bf16.mxu0 0
    %128 = vmatpush1.bf16.msra.mxu0 0
    %129 = vmatprep.subr.bf16.mxu0 0
    %130 = vmatpush1.bf16.msra.mxu0 0
    %131 = vmatprep.subr.bf16.mxu0 0
    %132 = vmatpush1.bf16.msra.mxu0 0
    %133 = vmatprep.subr.bf16.mxu0 0
    %134 = vmatpush1.bf16.msra.mxu0 0
    %135 = vmatprep.subr.bf16.mxu0 0
    %136 = vmatpush1.bf16.msra.mxu0 0
    %137 = vmatprep.subr.bf16.mxu0 0
    %138 = vmatpush1.bf16.msra.mxu0 0
    %139 = vmatprep.subr.bf16.mxu0 0
    %140 = vmatpush1.bf16.msra.mxu0 0
    %141 = vmatprep.mubr.bf16.mxu0 0
    %142 = vmatmul.mubr.bf16.gmra.mrb[0].mxu0 %v104
    %v143 = vpop.f32.mrb[0].mxu0
    %v144 = vadd.f32 %v75, %v143
    %v145 = vpop.f32.mrb[0].mxu0
    %v146 = vadd.f32 %v75, %v145
    %v147 = vpop.f32.mrb[0].mxu0
    %v148 = vadd.f32 %v80, %v147
    %v149 = vpop.f32.mrb[0].mxu0
    %v150 = vadd.f32 %v80, %v149
    %151 = vmatprep.mubr.bf16.mxu0 0
    %152 = vmatmul.mubr.bf16.gmra.mrb[0].mxu0 %v107
    %v153 = vpop.f32.mrb[0].mxu0
    %v154 = vadd.f32 %v85, %v153
    %v155 = vpop.f32.mrb[0].mxu0
    %v156 = vadd.f32 %v85, %v155
    %v157 = vpop.f32.mrb[0].mxu0
    %v158 = vadd.f32 %v90, %v157
    %v159 = vpop.f32.mrb[0].mxu0
    %v160 = vadd.f32 %v90, %v159
    %161 = vdwg.mxu0
    %v162 = vadd.f32 %v144, %v148
    %v163 = vrot.slane %v162, 4
    %v164 = vadd.f32 %v162, %v163
    %v165 = vrot.slane %v164, 2
    %v166 = vadd.f32 %v164, %v165
    %v167 = vrot.slane %v166, 1
    %v168 = vadd.f32 %v166, %v167
    %vm169 = vcmask 916480
    %v170 = vsel %vm169, %v146, 0.0
    %v171 = vsel %vm169, %v150, 0.0
    %v172 = vadd.f32 %v170, %v171
    %v173 = vrot.slane %v172, 4
    %v174 = vadd.f32 %v172, %v173
    %v175 = vrot.slane %v174, 2
    %v176 = vadd.f32 %v174, %v175
    %v177 = vrot.slane %v176, 1
    %v178 = vadd.f32 %v176, %v177
    %v179 = vrcp.pop 16.0
    %v180 = vmul.f32 %v168, %v179
    %v181 = vmul.f32 %v178, %v179
    %v182 = vsub.f32 %v144, %v180
    %v183 = vsub.f32 %v146, %v181
    %v184 = vsub.f32 %v148, %v180
    %v185 = vsub.f32 %v150, %v181
    %v186 = vmul.f32 %v182, %v182
    %v187 = vmul.f32 %v183, %v183
    %v188 = vmul.f32 %v184, %v184
    %v189 = vmul.f32 %v185, %v185
    %v190 = vadd.f32 %v186, %v188
    %v191 = vrot.slane %v190, 4
    %v192 = vadd.f32 %v190, %v191
    %v193 = vrot.slane %v192, 2
    %v194 = vadd.f32 %v192, %v193
    %v195 = vrot.slane %v194, 1
    %v196 = vadd.f32 %v194, %v195
    %v197 = vsel %vm169, %v187, 0.0
    %v198 = vsel %vm169, %v189, 0.0
    %v199 = vadd.f32 %v197, %v198
    %v200 = vrot.slane %v199, 4
    %v201 = vadd.f32 %v199, %v200
    %v202 = vrot.slane %v201, 2
    %v203 = vadd.f32 %v201, %v202
    %v204 = vrot.slane %v203, 1
    %v205 = vadd.f32 %v203, %v204
    %v206 = vmul.f32 %v196, %v179
    %v207 = vmul.f32 %v205, %v179
    %v208 = vadd.f32 %v206, 1e-05
    %v209 = vadd.f32 %v207, 1e-05
    %v210 = vrsqrt.pop %v208
    %v211 = vrsqrt.pop %v209
    %v212 = vmul.f32 %v182, %v210
    %v213 = vmul.f32 %v183, %v211
    %v214 = vmul.f32 %v184, %v210
    %v215 = vmul.f32 %v185, %v211
    %216 = vset.pattern.permute.xlu0 1
    %217 = vperm.xlu0 %216, %v45
    %v218 = vpop.permute.xlu0 %217
    %220 = vset.pattern.permute.xlu0 1
    %221 = vperm.xlu0 %220, %v46
    %v222 = vpop.permute.xlu0 %221
    %v224 = vmul.f32 %v212, %v218
    %v225 = vmul.f32 %v213, %v218
    %v226 = vmul.f32 %v214, %v222
    %v227 = vmul.f32 %v215, %v222
    %228 = vset.pattern.permute.xlu0 2
    %229 = vperm.xlu0 %228, %v45
    %v230 = vpop.permute.xlu0 %229
    %232 = vset.pattern.permute.xlu0 2
    %233 = vperm.xlu0 %232, %v46
    %v234 = vpop.permute.xlu0 %233
    %v236 = vadd.f32 %v224, %v230
    %v237 = vadd.f32 %v225, %v230
    %v238 = vadd.f32 %v226, %v234
    %v239 = vadd.f32 %v227, %v234
    %v240 = vadd.f32 %v154, %v158
    %v241 = vrot.slane %v240, 4
    %v242 = vadd.f32 %v240, %v241
    %v243 = vrot.slane %v242, 2
    %v244 = vadd.f32 %v242, %v243
    %v245 = vrot.slane %v244, 1
    %v246 = vadd.f32 %v244, %v245
    %v247 = vsel %vm169, %v156, 0.0
    %v248 = vsel %vm169, %v160, 0.0
    %v249 = vadd.f32 %v247, %v248
    %v250 = vrot.slane %v249, 4
    %v251 = vadd.f32 %v249, %v250
    %v252 = vrot.slane %v251, 2
    %v253 = vadd.f32 %v251, %v252
    %v254 = vrot.slane %v253, 1
    %v255 = vadd.f32 %v253, %v254
    %v256 = vmul.f32 %v246, %v179
    %v257 = vmul.f32 %v255, %v179
    %v258 = vsub.f32 %v154, %v256
    %v259 = vsub.f32 %v156, %v257
    %v260 = vsub.f32 %v158, %v256
    %v261 = vsub.f32 %v160, %v257
    %v262 = vmul.f32 %v258, %v258
    %v263 = vmul.f32 %v259, %v259
    %v264 = vmul.f32 %v260, %v260
    %v265 = vmul.f32 %v261, %v261
    %v266 = vadd.f32 %v262, %v264
    %v267 = vrot.slane %v266, 4
    %v268 = vadd.f32 %v266, %v267
    %v269 = vrot.slane %v268, 2
    %v270 = vadd.f32 %v268, %v269
    %v271 = vrot.slane %v270, 1
    %v272 = vadd.f32 %v270, %v271
    %v273 = vsel %vm169, %v263, 0.0
    %v274 = vsel %vm169, %v265, 0.0
    %v275 = vadd.f32 %v273, %v274
    %v276 = vrot.slane %v275, 4
    %v277 = vadd.f32 %v275, %v276
    %v278 = vrot.slane %v277, 2
    %v279 = vadd.f32 %v277, %v278
    %v280 = vrot.slane %v279, 1
    %v281 = vadd.f32 %v279, %v280
    %v282 = vmul.f32 %v272, %v179
    %v283 = vmul.f32 %v281, %v179
    %v284 = vadd.f32 %v282, 1e-05
    %v285 = vadd.f32 %v283, 1e-05
    %v286 = vrsqrt.pop %v284
    %v287 = vrsqrt.pop %v285
    %v288 = vmul.f32 %v258, %v286
    %v289 = vmul.f32 %v259, %v287
    %v290 = vmul.f32 %v260, %v286
    %v291 = vmul.f32 %v261, %v287
    %292 = vset.pattern.permute.xlu0 1
    %293 = vperm.xlu0 %292, %v47
    %v294 = vpop.permute.xlu0 %293
    %296 = vset.pattern.permute.xlu0 1
    %297 = vperm.xlu0 %296, %v48
    %v298 = vpop.permute.xlu0 %297
    %v300 = vmul.f32 %v288, %v294
    %v301 = vmul.f32 %v289, %v294
    %v302 = vmul.f32 %v290, %v298
    %v303 = vmul.f32 %v291, %v298
    %304 = vset.pattern.permute.xlu0 2
    %305 = vperm.xlu0 %304, %v47
    %v306 = vpop.permute.xlu0 %305
    %308 = vset.pattern.permute.xlu0 2
    %309 = vperm.xlu0 %308, %v48
    %v310 = vpop.permute.xlu0 %309
    %v312 = vadd.f32 %v300, %v306
    %v313 = vadd.f32 %v301, %v306
    %v314 = vadd.f32 %v302, %v310
    %v315 = vadd.f32 %v303, %v310
    %s316 = sld [smem:[#allocation2]]
    %v317 = vstv %s316
    %v318 = vmul.f32 %v317, %v236
    %v319 = vmul.f32 %v317, %v238
    %v320 = vmul.f32 %v317, %v312
    %v321 = vmul.f32 %v317, %v314
    %s322 = sld [smem:[#allocation2 + $0x1]]
    %v323 = vstv %s322
    %v324 = vmul.f32 %v323, %v236
    %v325 = vmul.f32 %v323, %v237
    %v326 = vmul.f32 %v323, %v238
    %v327 = vmul.f32 %v323, %v239
    %v328 = vmul.f32 %v323, %v312
    %v329 = vmul.f32 %v323, %v313
    %v330 = vmul.f32 %v323, %v314
    %v331 = vmul.f32 %v323, %v315
    %340 = vrot.lane.b32.xlu0 %v324, 48
    %v341 = vpop.permute.xlu0 %340
    %342 = vrot.lane.b32.xlu0 %v325, 48
    %v343 = vpop.permute.xlu0 %342
    %344 = vrot.lane.b32.xlu0 %v326, 48
    %v345 = vpop.permute.xlu0 %344
    %346 = vrot.lane.b32.xlu0 %v327, 48
    %v347 = vpop.permute.xlu0 %346
    %348 = vrot.lane.b32.xlu0 %v328, 48
    %v349 = vpop.permute.xlu0 %348
    %350 = vrot.lane.b32.xlu0 %v329, 48
    %v351 = vpop.permute.xlu0 %350
    %352 = vrot.lane.b32.xlu0 %v330, 48
    %v353 = vpop.permute.xlu0 %352
    %354 = vrot.lane.b32.xlu0 %v331, 48
    %v355 = vpop.permute.xlu0 %354
    %vm356 = vcmask 392192
    %v357 = vsel %vm356, %v341, %v343
    %v358 = vsel %vm356, %v345, %v347
    %v359 = vsel %vm356, %v349, %v351
    %v360 = vsel %vm356, %v353, %v355
    %v365 = vadd.f32 %v318, %v357
    %v366 = vadd.f32 %v319, %v358
    %v367 = vadd.f32 %v320, %v359
    %v368 = vadd.f32 %v321, %v360
    %s369 = sld [smem:[#allocation2 + $0x2]]
    %v370 = vstv %s369
    %v371 = vmul.f32 %v370, %v237
    %v372 = vmul.f32 %v370, %v239
    %v373 = vmul.f32 %v370, %v313
    %v374 = vmul.f32 %v370, %v315
    %379 = vrot.lane.b32.xlu0 %v371, 96
    %v380 = vpop.permute.xlu0 %379
    %381 = vrot.lane.b32.xlu0 %v372, 96
    %v382 = vpop.permute.xlu0 %381
    %383 = vrot.lane.b32.xlu0 %v373, 96
    %v384 = vpop.permute.xlu0 %383
    %385 = vrot.lane.b32.xlu0 %v374, 96
    %v386 = vpop.permute.xlu0 %385
    %v391 = vadd.f32 %v365, %v380
    %v392 = vadd.f32 %v366, %v382
    %v393 = vadd.f32 %v367, %v384
    %v394 = vadd.f32 %v368, %v386
    %v395 = vstv %s63
    %v396 = vadd.f32 %v391, %v395
    %v397 = vadd.f32 %v392, %v395
    %v398 = vadd.f32 %v393, %v395
    %v399 = vadd.f32 %v394, %v395
    %vm400 = vcmp.ge.f32.partialorder %v396, 0.0
    %vm401 = vcmp.ge.f32.partialorder %v397, 0.0
    %vm402 = vcmp.ge.f32.partialorder %v398, 0.0
    %vm403 = vcmp.ge.f32.partialorder %v399, 0.0
    %v404 = vmul.f32 %v396, 0.01
    %v405 = vmul.f32 %v397, 0.01
    %v406 = vmul.f32 %v398, 0.01
    %v407 = vmul.f32 %v399, 0.01
    %v408 = vsel %vm400, %v396, %v404
    %v409 = vsel %vm401, %v397, %v405
    %v410 = vsel %vm402, %v398, %v406
    %v411 = vsel %vm403, %v399, %v407
    %v412 = vstv %s64
    %v413 = vmul.f32 %v408, %v412
    %v414 = vmul.f32 %v409, %v412
    %v415 = vmul.f32 %v410, %v412
    %v416 = vmul.f32 %v411, %v412
    %v417 = vstv %s65
    %v418 = vadd.f32 %v413, %v417
    %v419 = vadd.f32 %v414, %v417
    %v420 = vadd.f32 %v415, %v417
    %v421 = vadd.f32 %v416, %v417
    %vm422 = vcmask 654336
    %v424 = vsel %vm422, %v418, 0
    %v427 = vsel %vm422, %v419, 0
    %v430 = vsel %vm422, %v420, 0
    %v433 = vsel %vm422, %v421, 0
    %435 = vmatprep.subr.mxu0 0.0
    %436 = vmatpush1.msra.mxu0 %v53
    %437 = vmatprep.subr.mxu0 0.0
    %438 = vmatpush1.msra.mxu0 %v54
    %439 = vmatprep.subr.mxu0 0.0
    %440 = vmatpush1.msra.mxu0 %v55
    %441 = vmatprep.subr.mxu0 0.0
    %442 = vmatpush1.msra.mxu0 %v56
    %443 = vmatprep.subr.mxu0 0.0
    %444 = vmatpush1.msra.mxu0 %v57
    %445 = vmatprep.subr.mxu0 0.0
    %446 = vmatpush1.msra.mxu0 %v58
    %447 = vmatprep.subr.mxu0 0.0
    %448 = vmatpush1.msra.mxu0 %v59
    %449 = vmatprep.subr.mxu0 0.0
    %450 = vmatpush1.msra.mxu0 %v60
    %451 = vmatprep.subr.mxu0 0.0
    %452 = vmatpush1.msra.mxu0 %v61
    %453 = vmatprep.subr.mxu0 0.0
    %454 = vmatpush1.msra.mxu0 %v62
    %455 = vmatprep.subr.mxu0 0.0
    %456 = vmatpush1.msra.mxu0 0.0
    %457 = vmatprep.subr.mxu0 0.0
    %458 = vmatpush1.msra.mxu0 0.0
    %459 = vmatprep.subr.mxu0 0.0
    %460 = vmatpush1.msra.mxu0 0.0
    %461 = vmatprep.subr.mxu0 0.0
    %462 = vmatpush1.msra.mxu0 0.0
    %463 = vmatprep.subr.mxu0 0.0
    %464 = vmatpush1.msra.mxu0 0.0
    %465 = vmatprep.subr.mxu0 0.0
    %466 = vmatpush1.msra.mxu0 0.0
    %467 = vmatprep.subr.mxu0 0.0
    %468 = vmatpush1.msra.mxu0 0.0
    %469 = vmatprep.subr.mxu0 0.0
    %470 = vmatpush1.msra.mxu0 0.0
    %471 = vmatprep.subr.mxu0 0.0
    %472 = vmatpush1.msra.mxu0 0.0
    %473 = vmatprep.subr.mxu0 0.0
    %474 = vmatpush1.msra.mxu0 0.0
    %475 = vmatprep.subr.mxu0 0.0
    %476 = vmatpush1.msra.mxu0 0.0
    %477 = vmatprep.subr.mxu0 0.0
    %478 = vmatpush1.msra.mxu0 0.0
    %479 = vmatprep.subr.mxu0 0.0
    %480 = vmatpush1.msra.mxu0 0.0
    %481 = vmatprep.subr.mxu0 0.0
    %482 = vmatpush1.msra.mxu0 0.0
    %483 = vmatprep.subr.mxu0 0.0
    %484 = vmatpush1.msra.mxu0 0.0
    %485 = vmatprep.subr.mxu0 0.0
    %486 = vmatpush1.msra.mxu0 0.0
    %487 = vmatprep.subr.mxu0 0.0
    %488 = vmatpush1.msra.mxu0 0.0
    %489 = vmatprep.subr.mxu0 0.0
    %490 = vmatpush1.msra.mxu0 0.0
    %491 = vmatprep.subr.mxu0 0.0
    %492 = vmatpush1.msra.mxu0 0.0
    %493 = vmatprep.subr.mxu0 0.0
    %494 = vmatpush1.msra.mxu0 0.0
    %495 = vmatprep.subr.mxu0 0.0
    %496 = vmatpush1.msra.mxu0 0.0
    %497 = vmatprep.subr.mxu0 0.0
    %498 = vmatpush1.msra.mxu0 0.0
    %499 = vmatprep.mubr.f32.mxu0 0.0
    %500 = vmatmul.mubr.f32.gmra.mrb[0].mxu0 %v424
    %v501 = vpop.f32.mrb[0].mxu0
    %v502 = vadd.f32 0.0, %v501
    %v503 = vpop.f32.mrb[0].mxu0
    %504 = vmatprep.mubr.f32.mxu0 0.0
    %505 = vmatmul.mubr.f32.gmra.mrb[0].mxu0 %v427
    %v506 = vpop.f32.mrb[0].mxu0
    %v507 = vadd.f32 0.0, %v506
    %v508 = vpop.f32.mrb[0].mxu0
    %509 = vmatprep.mubr.f32.mxu0 0.0
    %510 = vmatmul.mubr.f32.gmra.mrb[0].mxu0 %v430
    %v511 = vpop.f32.mrb[0].mxu0
    %v512 = vadd.f32 0.0, %v511
    %v513 = vpop.f32.mrb[0].mxu0
    %514 = vmatprep.mubr.f32.mxu0 0.0
    %515 = vmatmul.mubr.f32.gmra.mrb[0].mxu0 %v433
    %v516 = vpop.f32.mrb[0].mxu0
    %v517 = vadd.f32 0.0, %v516
    %v518 = vpop.f32.mrb[0].mxu0
    %519 = vdwg.mxu0
    %vm520 = vcmask 64512
    %v522 = vsel %vm520, %v502, 0
    %v525 = vsel %vm520, %v507, 0
    %v528 = vsel %vm520, %v512, 0
    %v531 = vsel %vm520, %v517, 0
    %533 = vmatprep.subr.mxu0 0.0
    %534 = vmatpush1.xpose.msra.mxu0 %v528
    %535 = vmatprep.subr.mxu0 0.0
    %536 = vmatpush1.xpose.msra.mxu0 %v531
    %537 = vmatprep.subr.mxu0 0.0
    %538 = vmatpush1.xpose.msra.mxu0 0.0
    %539 = vmatprep.subr.mxu0 0.0
    %540 = vmatpush1.xpose.msra.mxu0 0.0
    %541 = vmatprep.subr.mxu0 0.0
    %542 = vmatpush1.xpose.msra.mxu0 0.0
    %543 = vmatprep.subr.mxu0 0.0
    %544 = vmatpush1.xpose.msra.mxu0 0.0
    %545 = vmatprep.subr.mxu0 0.0
    %546 = vmatpush1.xpose.msra.mxu0 0.0
    %547 = vmatprep.subr.mxu0 0.0
    %548 = vmatpush1.xpose.msra.mxu0 0.0
    %549 = vmatprep.subr.mxu0 0.0
    %550 = vmatpush1.xpose.msra.mxu0 0.0
    %551 = vmatprep.subr.mxu0 0.0
    %552 = vmatpush1.xpose.msra.mxu0 0.0
    %553 = vmatprep.subr.mxu0 0.0
    %554 = vmatpush1.xpose.msra.mxu0 0.0
    %555 = vmatprep.subr.mxu0 0.0
    %556 = vmatpush1.xpose.msra.mxu0 0.0
    %557 = vmatprep.subr.mxu0 0.0
    %558 = vmatpush1.xpose.msra.mxu0 0.0
    %559 = vmatprep.subr.mxu0 0.0
    %560 = vmatpush1.xpose.msra.mxu0 0.0
    %561 = vmatprep.subr.mxu0 0.0
    %562 = vmatpush1.xpose.msra.mxu0 0.0
    %563 = vmatprep.subr.mxu0 0.0
    %564 = vmatpush1.xpose.msra.mxu0 0.0
    %565 = vmatprep.subr.mxu0 0.0
    %566 = vmatpush1.xpose.msra.mxu0 0.0
    %567 = vmatprep.subr.mxu0 0.0
    %568 = vmatpush1.xpose.msra.mxu0 0.0
    %569 = vmatprep.subr.mxu0 0.0
    %570 = vmatpush1.xpose.msra.mxu0 0.0
    %571 = vmatprep.subr.mxu0 0.0
    %572 = vmatpush1.xpose.msra.mxu0 0.0
    %573 = vmatprep.subr.mxu0 0.0
    %574 = vmatpush1.xpose.msra.mxu0 0.0
    %575 = vmatprep.subr.mxu0 0.0
    %576 = vmatpush1.xpose.msra.mxu0 0.0
    %577 = vmatprep.subr.mxu0 0.0
    %578 = vmatpush1.xpose.msra.mxu0 0.0
    %579 = vmatprep.subr.mxu0 0.0
    %580 = vmatpush1.xpose.msra.mxu0 0.0
    %581 = vmatprep.subr.mxu0 0.0
    %582 = vmatpush1.xpose.msra.mxu0 0.0
    %583 = vmatprep.subr.mxu0 0.0
    %584 = vmatpush1.xpose.msra.mxu0 0.0
    %585 = vmatprep.subr.mxu0 0.0
    %586 = vmatpush1.xpose.msra.mxu0 0.0
    %587 = vmatprep.subr.mxu0 0.0
    %588 = vmatpush1.xpose.msra.mxu0 0.0
    %589 = vmatprep.subr.mxu0 0.0
    %590 = vmatpush1.xpose.msra.mxu0 0.0
    %591 = vmatprep.subr.mxu0 0.0
    %592 = vmatpush1.xpose.msra.mxu0 0.0
    %593 = vmatprep.subr.mxu0 0.0
    %594 = vmatpush1.xpose.msra.mxu0 0.0
    %595 = vmatprep.subr.mxu0 0.0
    %596 = vmatpush1.xpose.msra.mxu0 0.0
    %597 = vmatprep.mubr.f32.mxu0 0.0
    %598 = vmatmul.mubr.f32.gmra.mrb[0].mxu0 %v522
    %v599 = vpop.f32.mrb[0].mxu0
    %v600 = vadd.f32 0.0, %v599
    %v601 = vpop.f32.mrb[0].mxu0
    %602 = vmatprep.mubr.f32.mxu0 0.0
    %603 = vmatmul.mubr.f32.gmra.mrb[0].mxu0 %v525
    %v604 = vpop.f32.mrb[0].mxu0
    %v605 = vadd.f32 0.0, %v604
    %v606 = vpop.f32.mrb[0].mxu0
    %607 = vdwg.mxu0
    %v608 = vrcp.pop 2.828427
    %v609 = vmul.f32 %v600, %v608
    %v610 = vmul.f32 %v605, %v608
    %v611 = vsel %vm102, %v609, -inf
    %612 = vmax.xlane.f32.xlu0 %v611
    %v613 = vpop.xlane.xlu0 %612
    %v614 = vsel %vm102, %v610, -inf
    %615 = vmax.xlane.f32.xlu0 %v614
    %v616 = vpop.xlane.xlu0 %615
    %v617 = vsub.f32 %v609, %v613
    %v618 = vsub.f32 %v610, %v616
    %v619 = vmul.f32 %v617, 1.442695
    %v620 = vpow.pop %v619
    %v621 = vmul.f32 %v618, 1.442695
    %v622 = vpow.pop %v621
    %v623 = vsel %vm102, %v620, 0.0
    %624 = vadd.xlane.f32.xlu0 %v623
    %v625 = vpop.xlane.xlu0 %624
    %v626 = vsel %vm102, %v622, 0.0
    %627 = vadd.xlane.f32.xlu0 %v626
    %v628 = vpop.xlane.xlu0 %627
    %v629 = vrcp.pop %v625
    %v630 = vmul.f32 %v620, %v629
    %v631 = vrcp.pop %v628
    %v632 = vmul.f32 %v622, %v631
    %v633 = vsel %vm102, %v630, 0.0
    %634 = vadd.xlane.f32.xlu0 %v633
    %v635 = vpop.xlane.xlu0 %634
    %v636 = vsel %vm102, %v632, 0.0
    %637 = vadd.xlane.f32.xlu0 %v636
    %v638 = vpop.xlane.xlu0 %637
    %v639 = vmul.f32 %v66, %v635
    %v640 = vmul.f32 %v67, %v635
    %v641 = vmul.f32 %v68, %v638
    %v642 = vmul.f32 %v69, %v638
    %644 = vset.pattern.permute.xlu0 0
    %645 = vperm.xlu0 %644, %v51
    %v646 = vpop.permute.xlu0 %645
    %649 = vset.pattern.permute.xlu0 0
    %650 = vperm.xlu0 %649, %v52
    %v651 = vpop.permute.xlu0 %650
    %v654 = vsel %vm102, %v49, 0
    %v657 = vsel %vm102, %v50, 0
    %659 = vmatprep.subr.mxu0 %v640
    %660 = vmatpush1.msra.mxu0 %v639
    %661 = vmatprep.subr.mxu0 %v642
    %662 = vmatpush1.msra.mxu0 %v641
    %663 = vmatprep.subr.mxu0 0.0
    %664 = vmatpush1.msra.mxu0 0.0
    %665 = vmatprep.subr.mxu0 0.0
    %666 = vmatpush1.msra.mxu0 0.0
    %667 = vmatprep.subr.mxu0 0.0
    %668 = vmatpush1.msra.mxu0 0.0
    %669 = vmatprep.subr.mxu0 0.0
    %670 = vmatpush1.msra.mxu0 0.0
    %671 = vmatprep.subr.mxu0 0.0
    %672 = vmatpush1.msra.mxu0 0.0
    %673 = vmatprep.subr.mxu0 0.0
    %674 = vmatpush1.msra.mxu0 0.0
    %675 = vmatprep.subr.mxu0 0.0
    %676 = vmatpush1.msra.mxu0 0.0
    %677 = vmatprep.subr.mxu0 0.0
    %678 = vmatpush1.msra.mxu0 0.0
    %679 = vmatprep.subr.mxu0 0.0
    %680 = vmatpush1.msra.mxu0 0.0
    %681 = vmatprep.subr.mxu0 0.0
    %682 = vmatpush1.msra.mxu0 0.0
    %683 = vmatprep.subr.mxu0 0.0
    %684 = vmatpush1.msra.mxu0 0.0
    %685 = vmatprep.subr.mxu0 0.0
    %686 = vmatpush1.msra.mxu0 0.0
    %687 = vmatprep.subr.mxu0 0.0
    %688 = vmatpush1.msra.mxu0 0.0
    %689 = vmatprep.subr.mxu0 0.0
    %690 = vmatpush1.msra.mxu0 0.0
    %691 = vmatprep.subr.mxu0 0.0
    %692 = vmatpush1.msra.mxu0 0.0
    %693 = vmatprep.subr.mxu0 0.0
    %694 = vmatpush1.msra.mxu0 0.0
    %695 = vmatprep.subr.mxu0 0.0
    %696 = vmatpush1.msra.mxu0 0.0
    %697 = vmatprep.subr.mxu0 0.0
    %698 = vmatpush1.msra.mxu0 0.0
    %699 = vmatprep.subr.mxu0 0.0
    %700 = vmatpush1.msra.mxu0 0.0
    %701 = vmatprep.subr.mxu0 0.0
    %702 = vmatpush1.msra.mxu0 0.0
    %703 = vmatprep.subr.mxu0 0.0
    %704 = vmatpush1.msra.mxu0 0.0
    %705 = vmatprep.subr.mxu0 0.0
    %706 = vmatpush1.msra.mxu0 0.0
    %707 = vmatprep.subr.mxu0 0.0
    %708 = vmatpush1.msra.mxu0 0.0
    %709 = vmatprep.subr.mxu0 0.0
    %710 = vmatpush1.msra.mxu0 0.0
    %711 = vmatprep.subr.mxu0 0.0
    %712 = vmatpush1.msra.mxu0 0.0
    %713 = vmatprep.subr.mxu0 0.0
    %714 = vmatpush1.msra.mxu0 0.0
    %715 = vmatprep.subr.mxu0 0.0
    %716 = vmatpush1.msra.mxu0 0.0
    %717 = vmatprep.subr.mxu0 0.0
    %718 = vmatpush1.msra.mxu0 0.0
    %719 = vmatprep.subr.mxu0 0.0
    %720 = vmatpush1.msra.mxu0 0.0
    %721 = vmatprep.subr.mxu0 0.0
    %722 = vmatpush1.msra.mxu0 0.0
    %723 = vmatprep.mubr.f32.mxu0 0.0
    %724 = vmatmul.mubr.f32.gmra.mrb[0].mxu0 %v654
    %v725 = vpop.f32.mrb[0].mxu0
    %v726 = vadd.f32 %v646, %v725
    %v727 = vpop.f32.mrb[0].mxu0
    %v728 = vadd.f32 %v646, %v727
    %729 = vmatprep.mubr.f32.mxu0 0.0
    %730 = vmatmul.mubr.f32.gmra.mrb[0].mxu0 %v657
    %v731 = vpop.f32.mrb[0].mxu0
    %v732 = vadd.f32 %v651, %v731
    %v733 = vpop.f32.mrb[0].mxu0
    %v734 = vadd.f32 %v651, %v733
    %735 = vdwg.mxu0
    %v736 = vadd.f32 %v726, %v732
    %v737 = vrot.slane %v736, 4
    %v738 = vadd.f32 %v736, %v737
    %v739 = vrot.slane %v738, 2
    %v740 = vadd.f32 %v738, %v739
    %v741 = vrot.slane %v740, 1
    %v742 = vadd.f32 %v740, %v741
    %v743 = vsel %vm169, %v728, 0.0
    %v744 = vsel %vm169, %v734, 0.0
    %v745 = vadd.f32 %v743, %v744
    %v746 = vrot.slane %v745, 4
    %v747 = vadd.f32 %v745, %v746
    %v748 = vrot.slane %v747, 2
    %v749 = vadd.f32 %v747, %v748
    %v750 = vrot.slane %v749, 1
    %v751 = vadd.f32 %v749, %v750
    %v752 = vmul.f32 %v742, %v179
    %v753 = vmul.f32 %v751, %v179
    %v754 = vsub.f32 %v726, %v752
    %v755 = vsub.f32 %v728, %v753
    %v756 = vsub.f32 %v732, %v752
    %v757 = vsub.f32 %v734, %v753
    %v758 = vmul.f32 %v754, %v754
    %v759 = vmul.f32 %v755, %v755
    %v760 = vmul.f32 %v756, %v756
    %v761 = vmul.f32 %v757, %v757
    %v762 = vadd.f32 %v758, %v760
    %v763 = vrot.slane %v762, 4
    %v764 = vadd.f32 %v762, %v763
    %v765 = vrot.slane %v764, 2
    %v766 = vadd.f32 %v764, %v765
    %v767 = vrot.slane %v766, 1
    %v768 = vadd.f32 %v766, %v767
    %v769 = vsel %vm169, %v759, 0.0
    %v770 = vsel %vm169, %v761, 0.0
    %v771 = vadd.f32 %v769, %v770
    %v772 = vrot.slane %v771, 4
    %v773 = vadd.f32 %v771, %v772
    %v774 = vrot.slane %v773, 2
    %v775 = vadd.f32 %v773, %v774
    %v776 = vrot.slane %v775, 1
    %v777 = vadd.f32 %v775, %v776
    %v778 = vmul.f32 %v768, %v179
    %v779 = vmul.f32 %v777, %v179
    %v780 = vadd.f32 %v778, 1e-05
    %v781 = vadd.f32 %v779, 1e-05
    %v782 = vrsqrt.pop %v780
    %v783 = vrsqrt.pop %v781
    %v784 = vmul.f32 %v754, %v782
    %v785 = vmul.f32 %v755, %v783
    %v786 = vmul.f32 %v756, %v782
    %v787 = vmul.f32 %v757, %v783
    %788 = vset.pattern.permute.xlu0 1
    %789 = vperm.xlu0 %788, %v51
    %v790 = vpop.permute.xlu0 %789
    %792 = vset.pattern.permute.xlu0 1
    %793 = vperm.xlu0 %792, %v52
    %v794 = vpop.permute.xlu0 %793
    %v796 = vmul.f32 %v784, %v790
    %v797 = vmul.f32 %v785, %v790
    %v798 = vmul.f32 %v786, %v794
    %v799 = vmul.f32 %v787, %v794
    %800 = vset.pattern.permute.xlu0 2
    %801 = vperm.xlu0 %800, %v51
    %v802 = vpop.permute.xlu0 %801
    %804 = vset.pattern.permute.xlu0 2
    %805 = vperm.xlu0 %804, %v52
    %v806 = vpop.permute.xlu0 %805
    %v808 = vadd.f32 %v796, %v802
    %v809 = vadd.f32 %v797, %v802
    %v810 = vadd.f32 %v798, %v806
    %v811 = vadd.f32 %v799, %v806
    %812 = vst [vmem:[#allocation5] sm:$0xff] %v808
    %813 = vst.msk [vmem:[#allocation5 + $0x8] sm:$0xff] %vm169, %v809
    %814 = vst [vmem:[#allocation5 + $0x10] sm:$0xff] %v810
    %815 = vst.msk [vmem:[#allocation5 + $0x18] sm:$0xff] %vm169, %v811
    %s816 = scalar_lea.vmem %s0, 32
    %v817 = vld [vmem:[%s816] sm:$0xff]
    %v818 = vld [vmem:[%s816 + $0x8] sm:$0xff]
    %v819 = vld [vmem:[%s816 + $0x10] sm:$0xff]
    %v820 = vld [vmem:[%s816 + $0x18] sm:$0xff]
    %v821 = vpack.c.bf16 %v819, %v817
    %v822 = vpack.c.bf16 %v820, %v818
    %823 = vmatprep.subr.bf16.mxu0 %v822
    %824 = vmatpush1.bf16.msra.mxu0 %v821
    %825 = vmatprep.subr.bf16.mxu0 0
    %826 = vmatpush1.bf16.msra.mxu0 0
    %827 = vmatprep.subr.bf16.mxu0 0
    %828 = vmatpush1.bf16.msra.mxu0 0
    %829 = vmatprep.subr.bf16.mxu0 0
    %830 = vmatpush1.bf16.msra.mxu0 0
    %831 = vmatprep.subr.bf16.mxu0 0
    %832 = vmatpush1.bf16.msra.mxu0 0
    %833 = vmatprep.subr.bf16.mxu0 0
    %834 = vmatpush1.bf16.msra.mxu0 0
    %835 = vmatprep.subr.bf16.mxu0 0
    %836 = vmatpush1.bf16.msra.mxu0 0
    %837 = vmatprep.subr.bf16.mxu0 0
    %838 = vmatpush1.bf16.msra.mxu0 0
    %839 = vmatprep.subr.bf16.mxu0 0
    %840 = vmatpush1.bf16.msra.mxu0 0
    %841 = vmatprep.subr.bf16.mxu0 0
    %842 = vmatpush1.bf16.msra.mxu0 0
    %843 = vmatprep.subr.bf16.mxu0 0
    %844 = vmatpush1.bf16.msra.mxu0 0
    %845 = vmatprep.subr.bf16.mxu0 0
    %846 = vmatpush1.bf16.msra.mxu0 0
    %847 = vmatprep.subr.bf16.mxu0 0
    %848 = vmatpush1.bf16.msra.mxu0 0
    %849 = vmatprep.subr.bf16.mxu0 0
    %850 = vmatpush1.bf16.msra.mxu0 0
    %851 = vmatprep.subr.bf16.mxu0 0
    %852 = vmatpush1.bf16.msra.mxu0 0
    %853 = vmatprep.subr.bf16.mxu0 0
    %854 = vmatpush1.bf16.msra.mxu0 0
    %855 = vmatprep.mubr.bf16.mxu0 0
    %856 = vmatmul.mubr.bf16.gmra.mrb[0].mxu0 %v104
    %v857 = vpop.f32.mrb[0].mxu0
    %v858 = vadd.f32 %v75, %v857
    %v859 = vpop.f32.mrb[0].mxu0
    %v860 = vadd.f32 %v75, %v859
    %v861 = vpop.f32.mrb[0].mxu0
    %v862 = vadd.f32 %v80, %v861
    %v863 = vpop.f32.mrb[0].mxu0
    %v864 = vadd.f32 %v80, %v863
    %865 = vmatprep.mubr.bf16.mxu0 0
    %866 = vmatmul.mubr.bf16.gmra.mrb[0].mxu0 %v107
    %v867 = vpop.f32.mrb[0].mxu0
    %v868 = vadd.f32 %v85, %v867
    %v869 = vpop.f32.mrb[0].mxu0
    %v870 = vadd.f32 %v85, %v869
    %v871 = vpop.f32.mrb[0].mxu0
    %v872 = vadd.f32 %v90, %v871
    %v873 = vpop.f32.mrb[0].mxu0
    %v874 = vadd.f32 %v90, %v873
    %875 = vdwg.mxu0
    %v876 = vadd.f32 %v858, %v862
    %v877 = vrot.slane %v876, 4
    %v878 = vadd.f32 %v876, %v877
    %v879 = vrot.slane %v878, 2
    %v880 = vadd.f32 %v878, %v879
    %v881 = vrot.slane %v880, 1
    %v882 = vadd.f32 %v880, %v881
    %v883 = vsel %vm169, %v860, 0.0
    %v884 = vsel %vm169, %v864, 0.0
    %v885 = vadd.f32 %v883, %v884
    %v886 = vrot.slane %v885, 4
    %v887 = vadd.f32 %v885, %v886
    %v888 = vrot.slane %v887, 2
    %v889 = vadd.f32 %v887, %v888
    %v890 = vrot.slane %v889, 1
    %v891 = vadd.f32 %v889, %v890
    %v892 = vmul.f32 %v882, %v179
    %v893 = vmul.f32 %v891, %v179
    %v894 = vsub.f32 %v858, %v892
    %v895 = vsub.f32 %v860, %v893
    %v896 = vsub.f32 %v862, %v892
    %v897 = vsub.f32 %v864, %v893
    %v898 = vmul.f32 %v894, %v894
    %v899 = vmul.f32 %v895, %v895
    %v900 = vmul.f32 %v896, %v896
    %v901 = vmul.f32 %v897, %v897
    %v902 = vadd.f32 %v898, %v900
    %v903 = vrot.slane %v902, 4
    %v904 = vadd.f32 %v902, %v903
    %v905 = vrot.slane %v904, 2
    %v906 = vadd.f32 %v904, %v905
    %v907 = vrot.slane %v906, 1
    %v908 = vadd.f32 %v906, %v907
    %v909 = vsel %vm169, %v899, 0.0
    %v910 = vsel %vm169, %v901, 0.0
    %v911 = vadd.f32 %v909, %v910
    %v912 = vrot.slane %v911, 4
    %v913 = vadd.f32 %v911, %v912
    %v914 = vrot.slane %v913, 2
    %v915 = vadd.f32 %v913, %v914
    %v916 = vrot.slane %v915, 1
    %v917 = vadd.f32 %v915, %v916
    %v918 = vmul.f32 %v908, %v179
    %v919 = vmul.f32 %v917, %v179
    %v920 = vadd.f32 %v918, 1e-05
    %v921 = vadd.f32 %v919, 1e-05
    %v922 = vrsqrt.pop %v920
    %v923 = vrsqrt.pop %v921
    %v924 = vmul.f32 %v894, %v922
    %v925 = vmul.f32 %v895, %v923
    %v926 = vmul.f32 %v896, %v922
    %v927 = vmul.f32 %v897, %v923
    %v928 = vmul.f32 %v924, %v218
    %v929 = vmul.f32 %v925, %v218
    %v930 = vmul.f32 %v926, %v222
    %v931 = vmul.f32 %v927, %v222
    %v932 = vadd.f32 %v928, %v230
    %v933 = vadd.f32 %v929, %v230
    %v934 = vadd.f32 %v930, %v234
    %v935 = vadd.f32 %v931, %v234
    %v936 = vadd.f32 %v868, %v872
    %v937 = vrot.slane %v936, 4
    %v938 = vadd.f32 %v936, %v937
    %v939 = vrot.slane %v938, 2
    %v940 = vadd.f32 %v938, %v939
    %v941 = vrot.slane %v940, 1
    %v942 = vadd.f32 %v940, %v941
    %v943 = vsel %vm169, %v870, 0.0
    %v944 = vsel %vm169, %v874, 0.0
    %v945 = vadd.f32 %v943, %v944
    %v946 = vrot.slane %v945, 4
    %v947 = vadd.f32 %v945, %v946
    %v948 = vrot.slane %v947, 2
    %v949 = vadd.f32 %v947, %v948
    %v950 = vrot.slane %v949, 1
    %v951 = vadd.f32 %v949, %v950
    %v952 = vmul.f32 %v942, %v179
    %v953 = vmul.f32 %v951, %v179
    %v954 = vsub.f32 %v868, %v952
    %v955 = vsub.f32 %v870, %v953
    %v956 = vsub.f32 %v872, %v952
    %v957 = vsub.f32 %v874, %v953
    %v958 = vmul.f32 %v954, %v954
    %v959 = vmul.f32 %v955, %v955
    %v960 = vmul.f32 %v956, %v956
    %v961 = vmul.f32 %v957, %v957
    %v962 = vadd.f32 %v958, %v960
    %v963 = vrot.slane %v962, 4
    %v964 = vadd.f32 %v962, %v963
    %v965 = vrot.slane %v964, 2
    %v966 = vadd.f32 %v964, %v965
    %v967 = vrot.slane %v966, 1
    %v968 = vadd.f32 %v966, %v967
    %v969 = vsel %vm169, %v959, 0.0
    %v970 = vsel %vm169, %v961, 0.0
    %v971 = vadd.f32 %v969, %v970
    %v972 = vrot.slane %v971, 4
    %v973 = vadd.f32 %v971, %v972
    %v974 = vrot.slane %v973, 2
    %v975 = vadd.f32 %v973, %v974
    %v976 = vrot.slane %v975, 1
    %v977 = vadd.f32 %v975, %v976
    %v978 = vmul.f32 %v968, %v179
    %v979 = vmul.f32 %v977, %v179
    %v980 = vadd.f32 %v978, 1e-05
    %v981 = vadd.f32 %v979, 1e-05
    %v982 = vrsqrt.pop %v980
    %v983 = vrsqrt.pop %v981
    %v984 = vmul.f32 %v954, %v982
    %v985 = vmul.f32 %v955, %v983
    %v986 = vmul.f32 %v956, %v982
    %v987 = vmul.f32 %v957, %v983
    %v988 = vmul.f32 %v984, %v294
    %v989 = vmul.f32 %v985, %v294
    %v990 = vmul.f32 %v986, %v298
    %v991 = vmul.f32 %v987, %v298
    %v992 = vadd.f32 %v988, %v306
    %v993 = vadd.f32 %v989, %v306
    %v994 = vadd.f32 %v990, %v310
    %v995 = vadd.f32 %v991, %v310
    %s996 = sld [smem:[#allocation2]]
    %v997 = vstv %s996
    %v998 = vmul.f32 %v997, %v932
    %v999 = vmul.f32 %v997, %v934
    %v1000 = vmul.f32 %v997, %v992
    %v1001 = vmul.f32 %v997, %v994
    %s1002 = sld [smem:[#allocation2 + $0x1]]
    %v1003 = vstv %s1002
    %v1004 = vmul.f32 %v1003, %v932
    %v1005 = vmul.f32 %v1003, %v933
    %v1006 = vmul.f32 %v1003, %v934
    %v1007 = vmul.f32 %v1003, %v935
    %v1008 = vmul.f32 %v1003, %v992
    %v1009 = vmul.f32 %v1003, %v993
    %v1010 = vmul.f32 %v1003, %v994
    %v1011 = vmul.f32 %v1003, %v995
    %1020 = vrot.lane.b32.xlu0 %v1004, 48
    %v1021 = vpop.permute.xlu0 %1020
    %1022 = vrot.lane.b32.xlu0 %v1005, 48
    %v1023 = vpop.permute.xlu0 %1022
    %1024 = vrot.lane.b32.xlu0 %v1006, 48
    %v1025 = vpop.permute.xlu0 %1024
    %1026 = vrot.lane.b32.xlu0 %v1007, 48
    %v1027 = vpop.permute.xlu0 %1026
    %1028 = vrot.lane.b32.xlu0 %v1008, 48
    %v1029 = vpop.permute.xlu0 %1028
    %1030 = vrot.lane.b32.xlu0 %v1009, 48
    %v1031 = vpop.permute.xlu0 %1030
    %1032 = vrot.lane.b32.xlu0 %v1010, 48
    %v1033 = vpop.permute.xlu0 %1032
    %1034 = vrot.lane.b32.xlu0 %v1011, 48
    %v1035 = vpop.permute.xlu0 %1034
    %v1036 = vsel %vm356, %v1021, %v1023
    %v1037 = vsel %vm356, %v1025, %v1027
    %v1038 = vsel %vm356, %v1029, %v1031
    %v1039 = vsel %vm356, %v1033, %v1035
    %v1044 = vadd.f32 %v998, %v1036
    %v1045 = vadd.f32 %v999, %v1037
    %v1046 = vadd.f32 %v1000, %v1038
    %v1047 = vadd.f32 %v1001, %v1039
    %s1048 = sld [smem:[#allocation2 + $0x2]]
    %v1049 = vstv %s1048
    %v1050 = vmul.f32 %v1049, %v933
    %v1051 = vmul.f32 %v1049, %v935
    %v1052 = vmul.f32 %v1049, %v993
    %v1053 = vmul.f32 %v1049, %v995
    %1058 = vrot.lane.b32.xlu0 %v1050, 96
    %v1059 = vpop.permute.xlu0 %1058
    %1060 = vrot.lane.b32.xlu0 %v1051, 96
    %v1061 = vpop.permute.xlu0 %1060
    %1062 = vrot.lane.b32.xlu0 %v1052, 96
    %v1063 = vpop.permute.xlu0 %1062
    %1064 = vrot.lane.b32.xlu0 %v1053, 96
    %v1065 = vpop.permute.xlu0 %1064
    %v1070 = vadd.f32 %v1044, %v1059
    %v1071 = vadd.f32 %v1045, %v1061
    %v1072 = vadd.f32 %v1046, %v1063
    %v1073 = vadd.f32 %v1047, %v1065
    %v1074 = vadd.f32 %v1070, %v395
    %v1075 = vadd.f32 %v1071, %v395
    %v1076 = vadd.f32 %v1072, %v395
    %v1077 = vadd.f32 %v1073, %v395
    %vm1078 = vcmp.ge.f32.partialorder %v1074, 0.0
    %vm1079 = vcmp.ge.f32.partialorder %v1075, 0.0
    %vm1080 = vcmp.ge.f32.partialorder %v1076, 0.0
    %vm1081 = vcmp.ge.f32.partialorder %v1077, 0.0
    %v1082 = vmul.f32 %v1074, 0.01
    %v1083 = vmul.f32 %v1075, 0.01
    %v1084 = vmul.f32 %v1076, 0.01
    %v1085 = vmul.f32 %v1077, 0.01
    %v1086 = vsel %vm1078, %v1074, %v1082
    %v1087 = vsel %vm1079, %v1075, %v1083
    %v1088 = vsel %vm1080, %v1076, %v1084
    %v1089 = vsel %vm1081, %v1077, %v1085
    %v1090 = vmul.f32 %v1086, %v412
    %v1091 = vmul.f32 %v1087, %v412
    %v1092 = vmul.f32 %v1088, %v412
    %v1093 = vmul.f32 %v1089, %v412
    %v1094 = vadd.f32 %v1090, %v417
    %v1095 = vadd.f32 %v1091, %v417
    %v1096 = vadd.f32 %v1092, %v417
    %v1097 = vadd.f32 %v1093, %v417
    %v1099 = vsel %vm422, %v1094, 0
    %v1102 = vsel %vm422, %v1095, 0
    %v1105 = vsel %vm422, %v1096, 0
    %v1108 = vsel %vm422, %v1097, 0
    %1110 = vmatprep.subr.mxu0 0.0
    %1111 = vmatpush1.msra.mxu0 %v53
    %1112 = vmatprep.subr.mxu0 0.0
    %1113 = vmatpush1.msra.mxu0 %v54
    %1114 = vmatprep.subr.mxu0 0.0
    %1115 = vmatpush1.msra.mxu0 %v55
    %1116 = vmatprep.subr.mxu0 0.0
    %1117 = vmatpush1.msra.mxu0 %v56
    %1118 = vmatprep.subr.mxu0 0.0
    %1119 = vmatpush1.msra.mxu0 %v57
    %1120 = vmatprep.subr.mxu0 0.0
    %1121 = vmatpush1.msra.mxu0 %v58
    %1122 = vmatprep.subr.mxu0 0.0
    %1123 = vmatpush1.msra.mxu0 %v59
    %1124 = vmatprep.subr.mxu0 0.0
    %1125 = vmatpush1.msra.mxu0 %v60
    %1126 = vmatprep.subr.mxu0 0.0
    %1127 = vmatpush1.msra.mxu0 %v61
    %1128 = vmatprep.subr.mxu0 0.0
    %1129 = vmatpush1.msra.mxu0 %v62
    %1130 = vmatprep.subr.mxu0 0.0
    %1131 = vmatpush1.msra.mxu0 0.0
    %1132 = vmatprep.subr.mxu0 0.0
    %1133 = vmatpush1.msra.mxu0 0.0
    %1134 = vmatprep.subr.mxu0 0.0
    %1135 = vmatpush1.msra.mxu0 0.0
    %1136 = vmatprep.subr.mxu0 0.0
    %1137 = vmatpush1.msra.mxu0 0.0
    %1138 = vmatprep.subr.mxu0 0.0
    %1139 = vmatpush1.msra.mxu0 0.0
    %1140 = vmatprep.subr.mxu0 0.0
    %1141 = vmatpush1.msra.mxu0 0.0
    %1142 = vmatprep.subr.mxu0 0.0
    %1143 = vmatpush1.msra.mxu0 0.0
    %1144 = vmatprep.subr.mxu0 0.0
    %1145 = vmatpush1.msra.mxu0 0.0
    %1146 = vmatprep.subr.mxu0 0.0
    %1147 = vmatpush1.msra.mxu0 0.0
    %1148 = vmatprep.subr.mxu0 0.0
    %1149 = vmatpush1.msra.mxu0 0.0
    %1150 = vmatprep.subr.mxu0 0.0
    %1151 = vmatpush1.msra.mxu0 0.0
    %1152 = vmatprep.subr.mxu0 0.0
    %1153 = vmatpush1.msra.mxu0 0.0
    %1154 = vmatprep.subr.mxu0 0.0
    %1155 = vmatpush1.msra.mxu0 0.0
    %1156 = vmatprep.subr.mxu0 0.0
    %1157 = vmatpush1.msra.mxu0 0.0
    %1158 = vmatprep.subr.mxu0 0.0
    %1159 = vmatpush1.msra.mxu0 0.0
    %1160 = vmatprep.subr.mxu0 0.0
    %1161 = vmatpush1.msra.mxu0 0.0
    %1162 = vmatprep.subr.mxu0 0.0
    %1163 = vmatpush1.msra.mxu0 0.0
    %1164 = vmatprep.subr.mxu0 0.0
    %1165 = vmatpush1.msra.mxu0 0.0
    %1166 = vmatprep.subr.mxu0 0.0
    %1167 = vmatpush1.msra.mxu0 0.0
    %1168 = vmatprep.subr.mxu0 0.0
    %1169 = vmatpush1.msra.mxu0 0.0
    %1170 = vmatprep.subr.mxu0 0.0
    %1171 = vmatpush1.msra.mxu0 0.0
    %1172 = vmatprep.subr.mxu0 0.0
    %1173 = vmatpush1.msra.mxu0 0.0
    %1174 = vmatprep.mubr.f32.mxu0 0.0
    %1175 = vmatmul.mubr.f32.gmra.mrb[0].mxu0 %v1099
    %v1176 = vpop.f32.mrb[0].mxu0
    %v1177 = vadd.f32 0.0, %v1176
    %v1178 = vpop.f32.mrb[0].mxu0
    %1179 = vmatprep.mubr.f32.mxu0 0.0
    %1180 = vmatmul.mubr.f32.gmra.mrb[0].mxu0 %v1102
    %v1181 = vpop.f32.mrb[0].mxu0
    %v1182 = vadd.f32 0.0, %v1181
    %v1183 = vpop.f32.mrb[0].mxu0
    %1184 = vmatprep.mubr.f32.mxu0 0.0
    %1185 = vmatmul.mubr.f32.gmra.mrb[0].mxu0 %v1105
    %v1186 = vpop.f32.mrb[0].mxu0
    %v1187 = vadd.f32 0.0, %v1186
    %v1188 = vpop.f32.mrb[0].mxu0
    %1189 = vmatprep.mubr.f32.mxu0 0.0
    %1190 = vmatmul.mubr.f32.gmra.mrb[0].mxu0 %v1108
    %v1191 = vpop.f32.mrb[0].mxu0
    %v1192 = vadd.f32 0.0, %v1191
    %v1193 = vpop.f32.mrb[0].mxu0
    %1194 = vdwg.mxu0
    %v1196 = vsel %vm520, %v1177, 0
    %v1199 = vsel %vm520, %v1182, 0
    %v1202 = vsel %vm520, %v1187, 0
    %v1205 = vsel %vm520, %v1192, 0
    %1207 = vmatprep.subr.mxu0 0.0
    %1208 = vmatpush1.xpose.msra.mxu0 %v1202
    %1209 = vmatprep.subr.mxu0 0.0
    %1210 = vmatpush1.xpose.msra.mxu0 %v1205
    %1211 = vmatprep.subr.mxu0 0.0
    %1212 = vmatpush1.xpose.msra.mxu0 0.0
    %1213 = vmatprep.subr.mxu0 0.0
    %1214 = vmatpush1.xpose.msra.mxu0 0.0
    %1215 = vmatprep.subr.mxu0 0.0
    %1216 = vmatpush1.xpose.msra.mxu0 0.0
    %1217 = vmatprep.subr.mxu0 0.0
    %1218 = vmatpush1.xpose.msra.mxu0 0.0
    %1219 = vmatprep.subr.mxu0 0.0
    %1220 = vmatpush1.xpose.msra.mxu0 0.0
    %1221 = vmatprep.subr.mxu0 0.0
    %1222 = vmatpush1.xpose.msra.mxu0 0.0
    %1223 = vmatprep.subr.mxu0 0.0
    %1224 = vmatpush1.xpose.msra.mxu0 0.0
    %1225 = vmatprep.subr.mxu0 0.0
    %1226 = vmatpush1.xpose.msra.mxu0 0.0
    %1227 = vmatprep.subr.mxu0 0.0
    %1228 = vmatpush1.xpose.msra.mxu0 0.0
    %1229 = vmatprep.subr.mxu0 0.0
    %1230 = vmatpush1.xpose.msra.mxu0 0.0
    %1231 = vmatprep.subr.mxu0 0.0
    %1232 = vmatpush1.xpose.msra.mxu0 0.0
    %1233 = vmatprep.subr.mxu0 0.0
    %1234 = vmatpush1.xpose.msra.mxu0 0.0
    %1235 = vmatprep.subr.mxu0 0.0
    %1236 = vmatpush1.xpose.msra.mxu0 0.0
    %1237 = vmatprep.subr.mxu0 0.0
    %1238 = vmatpush1.xpose.msra.mxu0 0.0
    %1239 = vmatprep.subr.mxu0 0.0
    %1240 = vmatpush1.xpose.msra.mxu0 0.0
    %1241 = vmatprep.subr.mxu0 0.0
    %1242 = vmatpush1.xpose.msra.mxu0 0.0
    %1243 = vmatprep.subr.mxu0 0.0
    %1244 = vmatpush1.xpose.msra.mxu0 0.0
    %1245 = vmatprep.subr.mxu0 0.0
    %1246 = vmatpush1.xpose.msra.mxu0 0.0
    %1247 = vmatprep.subr.mxu0 0.0
    %1248 = vmatpush1.xpose.msra.mxu0 0.0
    %1249 = vmatprep.subr.mxu0 0.0
    %1250 = vmatpush1.xpose.msra.mxu0 0.0
    %1251 = vmatprep.subr.mxu0 0.0
    %1252 = vmatpush1.xpose.msra.mxu0 0.0
    %1253 = vmatprep.subr.mxu0 0.0
    %1254 = vmatpush1.xpose.msra.mxu0 0.0
    %1255 = vmatprep.subr.mxu0 0.0
    %1256 = vmatpush1.xpose.msra.mxu0 0.0
    %1257 = vmatprep.subr.mxu0 0.0
    %1258 = vmatpush1.xpose.msra.mxu0 0.0
    %1259 = vmatprep.subr.mxu0 0.0
    %1260 = vmatpush1.xpose.msra.mxu0 0.0
    %1261 = vmatprep.subr.mxu0 0.0
    %1262 = vmatpush1.xpose.msra.mxu0 0.0
    %1263 = vmatprep.subr.mxu0 0.0
    %1264 = vmatpush1.xpose.msra.mxu0 0.0
    %1265 = vmatprep.subr.mxu0 0.0
    %1266 = vmatpush1.xpose.msra.mxu0 0.0
    %1267 = vmatprep.subr.mxu0 0.0
    %1268 = vmatpush1.xpose.msra.mxu0 0.0
    %1269 = vmatprep.subr.mxu0 0.0
    %1270 = vmatpush1.xpose.msra.mxu0 0.0
    %1271 = vmatprep.mubr.f32.mxu0 0.0
    %1272 = vmatmul.mubr.f32.gmra.mrb[0].mxu0 %v1196
    %v1273 = vpop.f32.mrb[0].mxu0
    %v1274 = vadd.f32 0.0, %v1273
    %v1275 = vpop.f32.mrb[0].mxu0
    %1276 = vmatprep.mubr.f32.mxu0 0.0
    %1277 = vmatmul.mubr.f32.gmra.mrb[0].mxu0 %v1199
    %v1278 = vpop.f32.mrb[0].mxu0
    %v1279 = vadd.f32 0.0, %v1278
    %v1280 = vpop.f32.mrb[0].mxu0
    %1281 = vdwg.mxu0
    %v1282 = vmul.f32 %v1274, %v608
    %v1283 = vmul.f32 %v1279, %v608
    %v1284 = vsel %vm102, %v1282, -inf
    %1285 = vmax.xlane.f32.xlu0 %v1284
    %v1286 = vpop.xlane.xlu0 %1285
    %v1287 = vsel %vm102, %v1283, -inf
    %1288 = vmax.xlane.f32.xlu0 %v1287
    %v1289 = vpop.xlane.xlu0 %1288
    %v1290 = vsub.f32 %v1282, %v1286
    %v1291 = vsub.f32 %v1283, %v1289
    %v1292 = vmul.f32 %v1290, 1.442695
    %v1293 = vpow.pop %v1292
    %v1294 = vmul.f32 %v1291, 1.442695
    %v1295 = vpow.pop %v1294
    %v1296 = vsel %vm102, %v1293, 0.0
    %1297 = vadd.xlane.f32.xlu0 %v1296
    %v1298 = vpop.xlane.xlu0 %1297
    %v1299 = vsel %vm102, %v1295, 0.0
    %1300 = vadd.xlane.f32.xlu0 %v1299
    %v1301 = vpop.xlane.xlu0 %1300
    %v1302 = vrcp.pop %v1298
    %v1303 = vmul.f32 %v1293, %v1302
    %v1304 = vrcp.pop %v1301
    %v1305 = vmul.f32 %v1295, %v1304
    %v1306 = vsel %vm102, %v1303, 0.0
    %1307 = vadd.xlane.f32.xlu0 %v1306
    %v1308 = vpop.xlane.xlu0 %1307
    %v1309 = vsel %vm102, %v1305, 0.0
    %1310 = vadd.xlane.f32.xlu0 %v1309
    %v1311 = vpop.xlane.xlu0 %1310
    %v1312 = vmul.f32 %v817, %v1308
    %v1313 = vmul.f32 %v818, %v1308
    %v1314 = vmul.f32 %v819, %v1311
    %v1315 = vmul.f32 %v820, %v1311
    %1316 = vmatprep.subr.mxu0 %v1313
    %1317 = vmatpush1.msra.mxu0 %v1312
    %1318 = vmatprep.subr.mxu0 %v1315
    %1319 = vmatpush1.msra.mxu0 %v1314
    %1320 = vmatprep.subr.mxu0 0.0
    %1321 = vmatpush1.msra.mxu0 0.0
    %1322 = vmatprep.subr.mxu0 0.0
    %1323 = vmatpush1.msra.mxu0 0.0
    %1324 = vmatprep.subr.mxu0 0.0
    %1325 = vmatpush1.msra.mxu0 0.0
    %1326 = vmatprep.subr.mxu0 0.0
    %1327 = vmatpush1.msra.mxu0 0.0
    %1328 = vmatprep.subr.mxu0 0.0
    %1329 = vmatpush1.msra.mxu0 0.0
    %1330 = vmatprep.subr.mxu0 0.0
    %1331 = vmatpush1.msra.mxu0 0.0
    %1332 = vmatprep.subr.mxu0 0.0
    %1333 = vmatpush1.msra.mxu0 0.0
    %1334 = vmatprep.subr.mxu0 0.0
    %1335 = vmatpush1.msra.mxu0 0.0
    %1336 = vmatprep.subr.mxu0 0.0
    %1337 = vmatpush1.msra.mxu0 0.0
    %1338 = vmatprep.subr.mxu0 0.0
    %1339 = vmatpush1.msra.mxu0 0.0
    %1340 = vmatprep.subr.mxu0 0.0
    %1341 = vmatpush1.msra.mxu0 0.0
    %1342 = vmatprep.subr.mxu0 0.0
    %1343 = vmatpush1.msra.mxu0 0.0
    %1344 = vmatprep.subr.mxu0 0.0
    %1345 = vmatpush1.msra.mxu0 0.0
    %1346 = vmatprep.subr.mxu0 0.0
    %1347 = vmatpush1.msra.mxu0 0.0
    %1348 = vmatprep.subr.mxu0 0.0
    %1349 = vmatpush1.msra.mxu0 0.0
    %1350 = vmatprep.subr.mxu0 0.0
    %1351 = vmatpush1.msra.mxu0 0.0
    %1352 = vmatprep.subr.mxu0 0.0
    %1353 = vmatpush1.msra.mxu0 0.0
    %1354 = vmatprep.subr.mxu0 0.0
    %1355 = vmatpush1.msra.mxu0 0.0
    %1356 = vmatprep.subr.mxu0 0.0
    %1357 = vmatpush1.msra.mxu0 0.0
    %1358 = vmatprep.subr.mxu0 0.0
    %1359 = vmatpush1.msra.mxu0 0.0
    %1360 = vmatprep.subr.mxu0 0.0
    %1361 = vmatpush1.msra.mxu0 0.0
    %1362 = vmatprep.subr.mxu0 0.0
    %1363 = vmatpush1.msra.mxu0 0.0
    %1364 = vmatprep.subr.mxu0 0.0
    %1365 = vmatpush1.msra.mxu0 0.0
    %1366 = vmatprep.subr.mxu0 0.0
    %1367 = vmatpush1.msra.mxu0 0.0
    %1368 = vmatprep.subr.mxu0 0.0
    %1369 = vmatpush1.msra.mxu0 0.0
    %1370 = vmatprep.subr.mxu0 0.0
    %1371 = vmatpush1.msra.mxu0 0.0
    %1372 = vmatprep.subr.mxu0 0.0
    %1373 = vmatpush1.msra.mxu0 0.0
    %1374 = vmatprep.subr.mxu0 0.0
    %1375 = vmatpush1.msra.mxu0 0.0
    %1376 = vmatprep.subr.mxu0 0.0
    %1377 = vmatpush1.msra.mxu0 0.0
    %1378 = vmatprep.subr.mxu0 0.0
    %1379 = vmatpush1.msra.mxu0 0.0
    %1380 = vmatprep.mubr.f32.mxu0 0.0
    %1381 = vmatmul.mubr.f32.gmra.mrb[0].mxu0 %v654
    %v1382 = vpop.f32.mrb[0].mxu0
    %v1383 = vadd.f32 %v646, %v1382
    %v1384 = vpop.f32.mrb[0].mxu0
    %v1385 = vadd.f32 %v646, %v1384
    %1386 = vmatprep.mubr.f32.mxu0 0.0
    %1387 = vmatmul.mubr.f32.gmra.mrb[0].mxu0 %v657
    %v1388 = vpop.f32.mrb[0].mxu0
    %v1389 = vadd.f32 %v651, %v1388
    %v1390 = vpop.f32.mrb[0].mxu0
    %v1391 = vadd.f32 %v651, %v1390
    %1392 = vdwg.mxu0
    %v1393 = vadd.f32 %v1383, %v1389
    %v1394 = vrot.slane %v1393, 4
    %v1395 = vadd.f32 %v1393, %v1394
    %v1396 = vrot.slane %v1395, 2
    %v1397 = vadd.f32 %v1395, %v1396
    %v1398 = vrot.slane %v1397, 1
    %v1399 = vadd.f32 %v1397, %v1398
    %v1400 = vsel %vm169, %v1385, 0.0
    %v1401 = vsel %vm169, %v1391, 0.0
    %v1402 = vadd.f32 %v1400, %v1401
    %v1403 = vrot.slane %v1402, 4
    %v1404 = vadd.f32 %v1402, %v1403
    %v1405 = vrot.slane %v1404, 2
    %v1406 = vadd.f32 %v1404, %v1405
    %v1407 = vrot.slane %v1406, 1
    %v1408 = vadd.f32 %v1406, %v1407
    %v1409 = vmul.f32 %v1399, %v179
    %v1410 = vmul.f32 %v1408, %v179
    %v1411 = vsub.f32 %v1383, %v1409
    %v1412 = vsub.f32 %v1385, %v1410
    %v1413 = vsub.f32 %v1389, %v1409
    %v1414 = vsub.f32 %v1391, %v1410
    %v1415 = vmul.f32 %v1411, %v1411
    %v1416 = vmul.f32 %v1412, %v1412
    %v1417 = vmul.f32 %v1413, %v1413
    %v1418 = vmul.f32 %v1414, %v1414
    %v1419 = vadd.f32 %v1415, %v1417
    %v1420 = vrot.slane %v1419, 4
    %v1421 = vadd.f32 %v1419, %v1420
    %v1422 = vrot.slane %v1421, 2
    %v1423 = vadd.f32 %v1421, %v1422
    %v1424 = vrot.slane %v1423, 1
    %v1425 = vadd.f32 %v1423, %v1424
    %v1426 = vsel %vm169, %v1416, 0.0
    %v1427 = vsel %vm169, %v1418, 0.0
    %v1428 = vadd.f32 %v1426, %v1427
    %v1429 = vrot.slane %v1428, 4
    %v1430 = vadd.f32 %v1428, %v1429
    %v1431 = vrot.slane %v1430, 2
    %v1432 = vadd.f32 %v1430, %v1431
    %v1433 = vrot.slane %v1432, 1
    %v1434 = vadd.f32 %v1432, %v1433
    %v1435 = vmul.f32 %v1425, %v179
    %v1436 = vmul.f32 %v1434, %v179
    %v1437 = vadd.f32 %v1435, 1e-05
    %v1438 = vadd.f32 %v1436, 1e-05
    %v1439 = vrsqrt.pop %v1437
    %v1440 = vrsqrt.pop %v1438
    %v1441 = vmul.f32 %v1411, %v1439
    %v1442 = vmul.f32 %v1412, %v1440
    %v1443 = vmul.f32 %v1413, %v1439
    %v1444 = vmul.f32 %v1414, %v1440
    %v1445 = vmul.f32 %v1441, %v790
    %v1446 = vmul.f32 %v1442, %v790
    %v1447 = vmul.f32 %v1443, %v794
    %v1448 = vmul.f32 %v1444, %v794
    %v1449 = vadd.f32 %v1445, %v802
    %v1450 = vadd.f32 %v1446, %v802
    %v1451 = vadd.f32 %v1447, %v806
    %v1452 = vadd.f32 %v1448, %v806
    %s1453 = scalar_lea.vmem [#allocation5], 32
    %1454 = vst [vmem:[%s1453] sm:$0xff] %v1449
    %1455 = vst.msk [vmem:[%s1453 + $0x8] sm:$0xff] %vm169, %v1450
    %1456 = vst [vmem:[%s1453 + $0x10] sm:$0xff] %v1451
    %1457 = vst.msk [vmem:[%s1453 + $0x18] sm:$0xff] %vm169, %v1452
    // Predicated region
    $region34: #{tpu_custom_call.1} parent=1 // pred_check
      _
    $region35: #{tpu_custom_call.1} parent=1 // pred_check_branch
      %1459 = sbr.rel (0) target = $region37
    $region36: #{tpu_custom_call.1} parent=1 // pred_region
      %s1461 = ssub.s32 1024, 1024
      %1462 = vsyncadd [#allocation3], %s1461
      %s1463 = sshll.u32 [#allocation5], 4
      %s1464 = int_to_ptr.vmem [resolvable:$true] %s1463
      %1469 = dma.vmem_to_hbm [thread:$0]  %s1464, 1024, %s7, [#allocation3], 256, 256, 16
    $region37: #{tpu_custom_call.1} parent=1 // pred_fallthru
      _
    // Predicated region
    $region38: #{tpu_custom_call.1} parent=1 // pred_check
      _
    $region39: #{tpu_custom_call.1} parent=1 // pred_check_branch
      %1471 = sbr.rel (0) target = $region41
    $region40: #{tpu_custom_call.1} parent=1 // pred_region
      %1472 = dma.done [#allocation3], 1024
    $region41: #{tpu_custom_call.1} parent=1 // pred_fallthru
      _
    %1473 = vsyncpa [#allocation3], 1
    %1474 = vsyncpa [#allocation4], 1

</llo_original>
